<compile_context>
chip_gen: v7x
topology: tpu7x:2x2x1
jax: 0.10.0
libtpu: 0.0.40
codegen_flags: <defaults>
</compile_context>

<pallas_src>
import math
import functools

import jax
import jax.numpy as jnp
from jax import lax
from jax.experimental import pallas as pl
from jax.experimental.pallas import tpu as pltpu


# ----------------------------------------------------------------------------
# helpers
# ----------------------------------------------------------------------------
def _pick_tile(n, candidates):
    """Largest candidate tile that divides n; falls back to the full extent."""
    for t in candidates:
        if t <= n and n % t == 0:
            return t
    return n


@functools.lru_cache(maxsize=None)
def _vmem_limit_bytes():
    """Generation-aware scoped-VMEM budget: ~3/4 of physical VMEM, capped at 100 MiB.

    -> ~48 MiB on v7x (64 MiB physical), ~96 MiB on v5e/v6e (128 MiB physical).
    """
    cap = 64 * 1024 * 1024
    try:
        cap = int(getattr(pltpu.get_tpu_info(), "vmem_capacity_bytes", cap))
    except Exception:
        pass
    return int(min(cap * 3 // 4, 100 * 1024 * 1024))


def _layernorm(x, w, b, eps=1e-5):
    mu = jnp.mean(x, axis=-1, keepdims=True)
    var = jnp.mean(jnp.square(x - mu), axis=-1, keepdims=True)
    return (x - mu) * lax.rsqrt(var + eps) * w + b


@functools.lru_cache(maxsize=None)
def _xlu_roll_ok():
    """Capability probe: pltpu.roll lowers on this build and matches jnp.roll semantics."""
    try:
        def k(x_ref, o_ref):
            o_ref[...] = pltpu.roll(x_ref[...], shift=3, axis=1)

        x = jnp.arange(8 * 128, dtype=jnp.float32).reshape(8, 128)
        y = pl.pallas_call(k, out_shape=jax.ShapeDtypeStruct((8, 128), jnp.float32))(x)
        return bool(jnp.allclose(y, jnp.roll(x, 3, axis=1)))
    except Exception:
        return False


def _reverse_tail_sum_scan(x, col, length):
    """rtail[q, j] = sum_{k > j} x[q, k]   (== disttotal - distcum of the reference).

    fp32 Hillis-Steele inclusive prefix sum along lanes via log2(S) XLU rotations:
    no MXU work, no (S, S) temporaries.
    """
    total = jnp.sum(x, axis=-1, keepdims=True)
    c = x
    d = 1
    while d < length:
        shifted = pltpu.roll(c, shift=d, axis=1)
        c = c + jnp.where(col >= d, shifted, 0.0)
        d *= 2
    return total - c


# ----------------------------------------------------------------------------
# Kernel 1: fused Q/K/V projections (row-tiled, bf16 weights resident, bf16 outputs)
# ----------------------------------------------------------------------------
def _qkv_kernel(xq_ref, xk_ref, xv_ref, wq_ref, wk_ref, wv_ref,
                bq_ref, bk_ref, bv_ref, q_ref, k_ref, v_ref):
    def proj(x_ref, w_ref, b_ref, o_ref):
        x = x_ref[...].astype(jnp.bfloat16)          # per-tile activation cast
        y = jnp.dot(x, w_ref[...], preferred_element_type=jnp.float32) + b_ref[...]
        o_ref[...] = y.astype(o_ref.dtype)

    proj(xq_ref, wq_ref, bq_ref, q_ref)
    proj(xk_ref, wk_ref, bk_ref, k_ref)
    proj(xv_ref, wv_ref, bv_ref, v_ref)


def qkv_projection(xq, xk, xv, wq, wk, wv, bq, bk, bv):
    M, D = xq.shape
    tm = _pick_tile(M, (1024, 512, 256, 128, 64, 32, 16, 8))
    row = pl.BlockSpec((tm, D), lambda i: (i, 0))
    wsp = pl.BlockSpec((D, D), lambda i: (0, 0))
    bsp = pl.BlockSpec((1, D), lambda i: (0, 0))
    return pl.pallas_call(
        _qkv_kernel,
        grid=(M // tm,),
        in_specs=[row, row, row, wsp, wsp, wsp, bsp, bsp, bsp],
        out_specs=(row, row, row),
        out_shape=(jax.ShapeDtypeStruct((M, D), jnp.bfloat16),) * 3,
        compiler_params=pltpu.CompilerParams(
            dimension_semantics=("parallel",),
            vmem_limit_bytes=_vmem_limit_bytes()),
    )(xq, xk, xv, wq, wk, wv,
      bq.reshape(1, D), bk.reshape(1, D), bv.reshape(1, D))


# ----------------------------------------------------------------------------
# Kernel 2: monotonic attention (all heads per step) + fused output projection
# ----------------------------------------------------------------------------
def _attn_kernel(q_ref, k_ref, v_ref, ow_ref, ob_ref, gam_ref, o_ref,
                 *, n_heads, d_k, mask_int, zero_pad, use_xlu_scan):
    tq = q_ref.shape[1]
    S = k_ref.shape[1]
    q_start = pl.program_id(1) * tq

    # Grid-invariant index material rebuilt from (tq, S) iotas; no (S, S) mask in HBM.
    row = lax.broadcasted_iota(jnp.int32, (tq, S), 0) + q_start      # global query index
    col = lax.broadcasted_iota(jnp.int32, (tq, S), 1)                # key index
    mask = col < (row + mask_int)                                    # src_mask (j < i + k)
    maskf = jnp.where(mask, 1.0, 0.0)
    pos_eff = jnp.abs(col - row).astype(jnp.float32)

    if use_xlu_scan:
        def rtail_fn(scores_):
            return _reverse_tail_sum_scan(scores_, col, S)
    else:
        # Fallback (only when pltpu.roll is unavailable): fp32 matmul against a
        # strict-upper-triangular 0/1 matrix -- cancellation-free, full precision.
        kk_i = lax.broadcasted_iota(jnp.int32, (S, S), 0)
        jj_i = lax.broadcasted_iota(jnp.int32, (S, S), 1)
        rev = jnp.where(kk_i > jj_i, 1.0, 0.0)

        def rtail_fn(scores_):
            return jnp.dot(scores_, rev, preferred_element_type=jnp.float32)

    qf = q_ref[0]          # (tq, D) bf16
    kf = k_ref[0]          # (S,  D) bf16
    vf = v_ref[0]          # (S,  D) bf16
    inv_sqrt_dk = 1.0 / math.sqrt(d_k)

    # Static unroll over heads: n_heads is small & static, per-head temporaries die by
    # dataflow, and a fori_loop would require unaligned dynamic lane slices of width d_k.
    head_out = []
    for h in range(n_heads):
        sl = slice(h * d_k, (h + 1) * d_k)
        q, k, v = qf[:, sl], kf[:, sl], vf[:, sl]

        scores = lax.dot_general(q, k, (((1,), (1,)), ((), ())),
                                 preferred_element_type=jnp.float32) * inv_sqrt_dk

        # NOTE: intentionally matches the reference -- softmax of the *unmasked*
        # scaled scores, then multiplied by the mask.  Do not "fix".
        m1 = jnp.max(scores, axis=-1, keepdims=True)
        e1 = jnp.exp(scores - m1)
        sm = e1 * pl.reciprocal(jnp.sum(e1, axis=-1, keepdims=True), approx=True)
        scores_ = sm * maskf                                          # fp32 probabilities

        rtail = rtail_fn(scores_)                                     # disttotal - distcum
        dist = jnp.sqrt(jnp.maximum(rtail * pos_eff, 0.0))
        neg_gamma = gam_ref[h]                     # == -softplus(gamma_h), precomputed
        total_effect = jnp.clip(jnp.exp(dist * neg_gamma), 1e-5, 1e5)

        s2 = jnp.where(mask, scores * total_effect, -1e32)
        m2 = jnp.max(s2, axis=-1, keepdims=True)
        e2 = jnp.exp(s2 - m2)
        p = e2 * pl.reciprocal(jnp.sum(e2, axis=-1, keepdims=True), approx=True)
        if zero_pad:
            p = jnp.where(row == 0, 0.0, p)

        head_out.append(jnp.dot(p.astype(jnp.bfloat16), v,
                                preferred_element_type=jnp.float32))  # (tq, d_k)

    # Fused output projection: one K=D matmul (better MXU occupancy than n_heads K=d_k).
    concat = jnp.concatenate(head_out, axis=-1).astype(jnp.bfloat16)  # (tq, D)
    o_ref[0] = jnp.dot(concat, ow_ref[...],
                       preferred_element_type=jnp.float32) + ob_ref[...]


def attention_block(q, k, v, o_w, o_b, neg_gamma, *, n_heads, mask_int, zero_pad,
                    use_xlu_scan):
    bs, S, D = q.shape
    d_k = D // n_heads
    tq = _pick_tile(S, (256, 128, 64, 32, 16, 8))   # q-row tiling; K/V resident per step
    kernel = functools.partial(_attn_kernel, n_heads=n_heads, d_k=d_k,
                               mask_int=mask_int, zero_pad=zero_pad,
                               use_xlu_scan=use_xlu_scan)
    return pl.pallas_call(
        kernel,
        grid=(bs, S // tq),
        in_specs=[
            pl.BlockSpec((1, tq, D), lambda b, i: (b, i, 0)),
            pl.BlockSpec((1, S, D), lambda b, i: (b, 0, 0)),
            pl.BlockSpec((1, S, D), lambda b, i: (b, 0, 0)),
            pl.BlockSpec((D, D), lambda b, i: (0, 0)),
            pl.BlockSpec((1, D), lambda b, i: (0, 0)),
            pl.BlockSpec(memory_space=pltpu.MemorySpace.SMEM),
        ],
        out_specs=pl.BlockSpec((1, tq, D), lambda b, i: (b, i, 0)),
        out_shape=jax.ShapeDtypeStruct((bs, S, D), jnp.float32),
        compiler_params=pltpu.CompilerParams(
            # Both grid axes write disjoint output tiles -> expose both to the megacore
            # scheduler (v7x: 2 TensorCores can split q-row tiles even at small batch).
            dimension_semantics=("parallel", "parallel"),
            vmem_limit_bytes=_vmem_limit_bytes()),
    )(q, k, v, o_w, o_b.reshape(1, D), neg_gamma)


# ----------------------------------------------------------------------------
# Kernel 3: residual + LN1 + position-wise FFN + residual + LN2 (row-tiled)
# ----------------------------------------------------------------------------
def _post_kernel(x_ref, a_ref, ln1w_ref, ln1b_ref, w1_ref, b1_ref,
                 w2_ref, b2_ref, ln2w_ref, ln2b_ref, o_ref, *, apply_pos):
    x = _layernorm(x_ref[...] + a_ref[...], ln1w_ref[...], ln1b_ref[...])
    if apply_pos:
        h1 = jnp.dot(x.astype(jnp.bfloat16), w1_ref[...],
                     preferred_element_type=jnp.float32) + b1_ref[...]
        h1 = jnp.maximum(h1, 0.0)
        f = jnp.dot(h1.astype(jnp.bfloat16), w2_ref[...],
                    preferred_element_type=jnp.float32) + b2_ref[...]
        x = _layernorm(x + f, ln2w_ref[...], ln2b_ref[...])
    o_ref[...] = x


def post_block(x, attn, params, apply_pos):
    M, D = x.shape
    w1 = params["w1"].astype(jnp.bfloat16)          # bf16 resident FFN weights
    w2 = params["w2"].astype(jnp.bfloat16)
    d_ff = w1.shape[1]
    tm = _pick_tile(M, (1024, 512, 256, 128, 64, 32, 16, 8))
    row = pl.BlockSpec((tm, D), lambda i: (i, 0))
    vecD = pl.BlockSpec((1, D), lambda i: (0, 0))
    vecF = pl.BlockSpec((1, d_ff), lambda i: (0, 0))
    w1s = pl.BlockSpec((D, d_ff), lambda i: (0, 0))
    w2s = pl.BlockSpec((d_ff, D), lambda i: (0, 0))
    kernel = functools.partial(_post_kernel, apply_pos=apply_pos)
    return pl.pallas_call(
        kernel,
        grid=(M // tm,),
        in_specs=[row, row, vecD, vecD, w1s, vecF, w2s, vecD, vecD, vecD],
        out_specs=row,
        out_shape=jax.ShapeDtypeStruct((M, D), jnp.float32),
        compiler_params=pltpu.CompilerParams(
            dimension_semantics=("parallel",),
            vmem_limit_bytes=_vmem_limit_bytes()),
    )(x, attn,
      params["ln1_w"].reshape(1, D), params["ln1_b"].reshape(1, D),
      w1, params["b1"].reshape(1, d_ff),
      w2, params["b2"].reshape(1, D),
      params["ln2_w"].reshape(1, D), params["ln2_b"].reshape(1, D))


# ----------------------------------------------------------------------------
# Wrapper (only free reshapes, bf16 weight casts and parameter plumbing in plain JAX)
# ----------------------------------------------------------------------------
def transformer_layer(mask_int, query, key_t, values, params, apply_pos=True):
    bs, S, D = query.shape
    h = params["n_heads"]
    mask_int = int(mask_int)          # static (mirrors np.triu(k=mask) in PyTorch)
    zero_pad = (mask_int == 0)

    xq = query.reshape(bs * S, D)
    xk = key_t.reshape(bs * S, D)
    xv = values.reshape(bs * S, D)

    if params["kq_same"]:
        q_w, q_b = params["k_w"], params["k_b"]
    else:
        q_w, q_b = params["q_w"], params["q_b"]

    # Projection weights ship to the kernels in bf16 (fp32 accumulation unchanged).
    to_bf16 = lambda a: a.astype(jnp.bfloat16)
    q2, k2, v2 = qkv_projection(
        xq, xk, xv,
        to_bf16(q_w), to_bf16(params["k_w"]), to_bf16(params["v_w"]),
        q_b, params["k_b"], params["v_b"])

    neg_gamma = (-jax.nn.softplus(params["gammas"].reshape(h))).astype(jnp.float32)
    attn = attention_block(
        q2.reshape(bs, S, D), k2.reshape(bs, S, D), v2.reshape(bs, S, D),
        to_bf16(params["o_w"]), params["o_b"], neg_gamma,
        n_heads=h, mask_int=mask_int, zero_pad=zero_pad,
        use_xlu_scan=_xlu_roll_ok())

    out = post_block(xq, attn.reshape(bs * S, D), params, apply_pos=apply_pos)
    return out.reshape(bs, S, D)


# ----------------------------------------------------------------------------
# Deterministic parameter init (shapes from the PyTorch __init__)
# ----------------------------------------------------------------------------
def init_params(key, d_model, d_ff, n_heads, kq_same):
    ks = jax.random.split(key, 10)

    def xavier(k, fan_in, fan_out):
        a = math.sqrt(6.0 / (fan_in + fan_out))
        return jax.random.uniform(k, (fan_in, fan_out), jnp.float32, -a, a)

    p = dict(n_heads=n_heads, kq_same=kq_same)
    p["k_w"] = xavier(ks[0], d_model, d_model)
    p["k_b"] = jnp.zeros((d_model,), jnp.float32)
    p["q_w"] = xavier(ks[1], d_model, d_model)
    p["q_b"] = jnp.zeros((d_model,), jnp.float32)
    p["v_w"] = xavier(ks[2], d_model, d_model)
    p["v_b"] = jnp.zeros((d_model,), jnp.float32)
    p["o_w"] = xavier(ks[3], d_model, d_model)
    p["o_b"] = jnp.zeros((d_model,), jnp.float32)
    p["gammas"] = jax.random.uniform(ks[4], (n_heads, 1, 1), jnp.float32, -0.5, 0.5)

    a1 = 1.0 / math.sqrt(d_model)
    p["w1"] = jax.random.uniform(ks[5], (d_model, d_ff), jnp.float32, -a1, a1)
    p["b1"] = jax.random.uniform(ks[6], (d_ff,), jnp.float32, -a1, a1)
    a2 = 1.0 / math.sqrt(d_ff)
    p["w2"] = jax.random.uniform(ks[7], (d_ff, d_model), jnp.float32, -a2, a2)
    p["b2"] = jax.random.uniform(ks[8], (d_model,), jnp.float32, -a2, a2)

    p["ln1_w"] = jnp.ones((d_model,), jnp.float32)
    p["ln1_b"] = jnp.zeros((d_model,), jnp.float32)
    p["ln2_w"] = jnp.ones((d_model,), jnp.float32)
    p["ln2_b"] = jnp.zeros((d_model,), jnp.float32)
    return p


# ----------------------------------------------------------------------------
# Pure-JAX fp32 reference (mirrors the PyTorch forward exactly), for validation
# ----------------------------------------------------------------------------
def reference(mask_int, query, key_t, values, params, apply_pos=True):
    bs, S, D = query.shape
    h = params["n_heads"]
    dk = D // h
    ii = jnp.arange(S)[:, None]
    jj = jnp.arange(S)[None, :]
    src_mask = (jj < ii + mask_int).astype(jnp.float32)[None, None]

    lin = lambda x, w, b: x @ w + b
    k = lin(key_t, params["k_w"], params["k_b"])
    if params["kq_same"]:
        q = lin(query, params["k_w"], params["k_b"])
    else:
        q = lin(query, params["q_w"], params["q_b"])
    v = lin(values, params["v_w"], params["v_b"])
    to_heads = lambda x: x.reshape(bs, S, h, dk).transpose(0, 2, 1, 3)
    q, k, v = to_heads(q), to_heads(k), to_heads(v)

    scores = jnp.einsum("bhqd,bhkd->bhqk", q, k) / math.sqrt(dk)
    sm = jax.nn.softmax(scores, axis=-1)
    scores_ = sm * src_mask
    distcum = jnp.cumsum(scores_, axis=-1)
    disttotal = jnp.sum(scores_, axis=-1, keepdims=True)
    pos = jnp.abs(jj - ii).astype(jnp.float32)[None, None]
    dist = jnp.sqrt(jnp.maximum((disttotal - distcum) * pos, 0.0))
    gamma = -jax.nn.softplus(params["gammas"].reshape(1, h, 1, 1))
    total_effect = jnp.clip(jnp.exp(dist * gamma), 1e-5, 1e5)
    scores = scores * total_effect
    scores = jnp.where(src_mask == 0, -1e32, scores)
    p = jax.nn.softmax(scores, axis=-1)
    if mask_int == 0:
        p = p.at[:, :, 0, :].set(0.0)
    out = jnp.einsum("bhqk,bhkd->bhqd", p, v)
    concat = out.transpose(0, 2, 1, 3).reshape(bs, S, D)
    attn_out = lin(concat, params["o_w"], params["o_b"])

    def ln(x, w, b):
        mu = x.mean(-1, keepdims=True)
        var = ((x - mu) ** 2).mean(-1, keepdims=True)
        return (x - mu) / jnp.sqrt(var + 1e-5) * w + b

    x = ln(query + attn_out, params["ln1_w"], params["ln1_b"])
    if apply_pos:
        hdn = jnp.maximum(lin(x, params["w1"], params["b1"]), 0.0)
        f = lin(hdn, params["w2"], params["b2"])
        x = ln(x + f, params["ln2_w"], params["ln2_b"])
    return x


# ----------------------------------------------------------------------------
if __name__ == "__main__":
    # Dims chosen so d_k == 128 and S == 128: every lane slice / concat / rotation is
    # native-aligned while the problem stays small (runs in well under a second).
    d_model, d_ff, n_heads = 256, 512, 2
    bs, S = 2, 128

    key = jax.random.PRNGKey(0)
    kp, kq, kk, kv = jax.random.split(key, 4)
    params = init_params(kp, d_model, d_ff, n_heads, kq_same=False)

    query = jax.random.normal(kq, (bs, S, d_model), jnp.float32)
    key_t = jax.random.normal(kk, (bs, S, d_model), jnp.float32)
    values = jax.random.normal(kv, (bs, S, d_model), jnp.float32)

    out = transformer_layer(0, query, key_t, values, params, apply_pos=True)
    out = jax.block_until_ready(out)

    ref = reference(0, query, key_t, values, params, apply_pos=True)
    assert out.shape == (bs, S, d_model)
    assert bool(jnp.all(jnp.isfinite(out)))
    # Kernel uses bf16 MXU operands / bf16-stored activations with fp32 accumulation;
    # compare against the fp32 reference with a bf16-appropriate tolerance.
    max_err = float(jnp.max(jnp.abs(out - ref)))
    assert max_err < 2e-1, f"mismatch vs reference: {max_err}"

    print("KERNEL_OK")
</pallas_src>

<mosaic_0001>
module attributes {stable_mosaic.version = 11 : i64} {
  func.func @_qkv_kernel(%arg0: i32, %arg1: memref<256x256xf32, #tpu.memory_space<vmem>>, %arg2: memref<256x256xf32, #tpu.memory_space<vmem>>, %arg3: memref<256x256xf32, #tpu.memory_space<vmem>>, %arg4: memref<256x256xbf16, #tpu.memory_space<vmem>>, %arg5: memref<256x256xbf16, #tpu.memory_space<vmem>>, %arg6: memref<256x256xbf16, #tpu.memory_space<vmem>>, %arg7: memref<1x256xf32, #tpu.memory_space<vmem>>, %arg8: memref<1x256xf32, #tpu.memory_space<vmem>>, %arg9: memref<1x256xf32, #tpu.memory_space<vmem>>, %arg10: memref<256x256xbf16, #tpu.memory_space<vmem>>, %arg11: memref<256x256xbf16, #tpu.memory_space<vmem>>, %arg12: memref<256x256xbf16, #tpu.memory_space<vmem>>) attributes {dimension_semantics = [#tpu.dimension_semantics<parallel>], iteration_bounds = array<i64: 1>, scalar_prefetch = 0 : i64, scratch_operands = 0 : i64, tpu.core_type = #tpu.core_type<tc>, window_params = [{transform_indices = @transform_0, window_bounds = array<i64: 256, 256>}, {transform_indices = @transform_1, window_bounds = array<i64: 256, 256>}, {transform_indices = @transform_2, window_bounds = array<i64: 256, 256>}, {pipeline_mode = #tpu.pipeline_mode<synchronous>, transform_indices = @transform_3, window_bounds = array<i64: 256, 256>}, {pipeline_mode = #tpu.pipeline_mode<synchronous>, transform_indices = @transform_4, window_bounds = array<i64: 256, 256>}, {pipeline_mode = #tpu.pipeline_mode<synchronous>, transform_indices = @transform_5, window_bounds = array<i64: 256, 256>}, {pipeline_mode = #tpu.pipeline_mode<synchronous>, transform_indices = @transform_6, window_bounds = array<i64: 1, 256>}, {pipeline_mode = #tpu.pipeline_mode<synchronous>, transform_indices = @transform_7, window_bounds = array<i64: 1, 256>}, {pipeline_mode = #tpu.pipeline_mode<synchronous>, transform_indices = @transform_8, window_bounds = array<i64: 1, 256>}, {transform_indices = @transform_9, window_bounds = array<i64: 256, 256>}, {transform_indices = @transform_10, window_bounds = array<i64: 256, 256>}, {transform_indices = @transform_11, window_bounds = array<i64: 256, 256>}]} {
    %c0 = arith.constant 0 : index
    %c0_0 = arith.constant 0 : index
    %0 = vector.load %arg1[%c0, %c0_0] : memref<256x256xf32, #tpu.memory_space<vmem>>, vector<256x256xf32>
    %1 = arith.truncf %0 : vector<256x256xf32> to vector<256x256xbf16>
    %c0_1 = arith.constant 0 : index
    %c0_2 = arith.constant 0 : index
    %2 = vector.load %arg4[%c0_1, %c0_2] : memref<256x256xbf16, #tpu.memory_space<vmem>>, vector<256x256xbf16>
    %cst = arith.constant dense<0.000000e+00> : vector<256x256xf32>
    %3 = tpu.matmul %1, %2, %cst {dimension_numbers = #tpu.dot_dimension_numbers<[1], [0], [0], [1], [0, 0, 1, 1], [], []>} : vector<256x256xbf16>, vector<256x256xbf16>, vector<256x256xf32> -> vector<256x256xf32>
    %c0_3 = arith.constant 0 : index
    %c0_4 = arith.constant 0 : index
    %4 = vector.load %arg7[%c0_3, %c0_4] : memref<1x256xf32, #tpu.memory_space<vmem>>, vector<1x256xf32>
    %5 = vector.broadcast %4 : vector<1x256xf32> to vector<256x256xf32>
    %6 = arith.addf %3, %5 : vector<256x256xf32>
    %7 = arith.truncf %6 : vector<256x256xf32> to vector<256x256xbf16>
    %c0_5 = arith.constant 0 : index
    %c0_6 = arith.constant 0 : index
    %8 = vector.load %arg10[%c0_5, %c0_6] : memref<256x256xbf16, #tpu.memory_space<vmem>>, vector<256x256xbf16>
    tpu.vector_store %arg10[%c0_5, %c0_6], %7 {strides = array<i32>} : memref<256x256xbf16, #tpu.memory_space<vmem>>, vector<256x256xbf16>,
    %c0_7 = arith.constant 0 : index
    %c0_8 = arith.constant 0 : index
    %9 = vector.load %arg2[%c0_7, %c0_8] : memref<256x256xf32, #tpu.memory_space<vmem>>, vector<256x256xf32>
    %10 = arith.truncf %9 : vector<256x256xf32> to vector<256x256xbf16>
    %c0_9 = arith.constant 0 : index
    %c0_10 = arith.constant 0 : index
    %11 = vector.load %arg5[%c0_9, %c0_10] : memref<256x256xbf16, #tpu.memory_space<vmem>>, vector<256x256xbf16>
    %cst_11 = arith.constant dense<0.000000e+00> : vector<256x256xf32>
    %12 = tpu.matmul %10, %11, %cst_11 {dimension_numbers = #tpu.dot_dimension_numbers<[1], [0], [0], [1], [0, 0, 1, 1], [], []>} : vector<256x256xbf16>, vector<256x256xbf16>, vector<256x256xf32> -> vector<256x256xf32>
    %c0_12 = arith.constant 0 : index
    %c0_13 = arith.constant 0 : index
    %13 = vector.load %arg8[%c0_12, %c0_13] : memref<1x256xf32, #tpu.memory_space<vmem>>, vector<1x256xf32>
    %14 = vector.broadcast %13 : vector<1x256xf32> to vector<256x256xf32>
    %15 = arith.addf %12, %14 : vector<256x256xf32>
    %16 = arith.truncf %15 : vector<256x256xf32> to vector<256x256xbf16>
    %c0_14 = arith.constant 0 : index
    %c0_15 = arith.constant 0 : index
    %17 = vector.load %arg11[%c0_14, %c0_15] : memref<256x256xbf16, #tpu.memory_space<vmem>>, vector<256x256xbf16>
    tpu.vector_store %arg11[%c0_14, %c0_15], %16 {strides = array<i32>} : memref<256x256xbf16, #tpu.memory_space<vmem>>, vector<256x256xbf16>,
    %c0_16 = arith.constant 0 : index
    %c0_17 = arith.constant 0 : index
    %18 = vector.load %arg3[%c0_16, %c0_17] : memref<256x256xf32, #tpu.memory_space<vmem>>, vector<256x256xf32>
    %19 = arith.truncf %18 : vector<256x256xf32> to vector<256x256xbf16>
    %c0_18 = arith.constant 0 : index
    %c0_19 = arith.constant 0 : index
    %20 = vector.load %arg6[%c0_18, %c0_19] : memref<256x256xbf16, #tpu.memory_space<vmem>>, vector<256x256xbf16>
    %cst_20 = arith.constant dense<0.000000e+00> : vector<256x256xf32>
    %21 = tpu.matmul %19, %20, %cst_20 {dimension_numbers = #tpu.dot_dimension_numbers<[1], [0], [0], [1], [0, 0, 1, 1], [], []>} : vector<256x256xbf16>, vector<256x256xbf16>, vector<256x256xf32> -> vector<256x256xf32>
    %c0_21 = arith.constant 0 : index
    %c0_22 = arith.constant 0 : index
    %22 = vector.load %arg9[%c0_21, %c0_22] : memref<1x256xf32, #tpu.memory_space<vmem>>, vector<1x256xf32>
    %23 = vector.broadcast %22 : vector<1x256xf32> to vector<256x256xf32>
    %24 = arith.addf %21, %23 : vector<256x256xf32>
    %25 = arith.truncf %24 : vector<256x256xf32> to vector<256x256xbf16>
    %c0_23 = arith.constant 0 : index
    %c0_24 = arith.constant 0 : index
    %26 = vector.load %arg12[%c0_23, %c0_24] : memref<256x256xbf16, #tpu.memory_space<vmem>>, vector<256x256xbf16>
    tpu.vector_store %arg12[%c0_23, %c0_24], %25 {strides = array<i32>} : memref<256x256xbf16, #tpu.memory_space<vmem>>, vector<256x256xbf16>,
    return
  }
  func.func @transform_0(%arg0: i32) -> (i32, i32) {
    %c0_i32 = arith.constant 0 : i32
    %c0_i32_0 = arith.constant 0 : i32
    return %arg0, %c0_i32 : i32, i32
  }
  func.func @transform_1(%arg0: i32) -> (i32, i32) {
    %c0_i32 = arith.constant 0 : i32
    %c0_i32_0 = arith.constant 0 : i32
    return %arg0, %c0_i32 : i32, i32
  }
  func.func @transform_2(%arg0: i32) -> (i32, i32) {
    %c0_i32 = arith.constant 0 : i32
    %c0_i32_0 = arith.constant 0 : i32
    return %arg0, %c0_i32 : i32, i32
  }
  func.func @transform_3(%arg0: i32) -> (i32, i32) {
    %c0_i32 = arith.constant 0 : i32
    %c0_i32_0 = arith.constant 0 : i32
    %c0_i32_1 = arith.constant 0 : i32
    return %c0_i32, %c0_i32_0 : i32, i32
  }
  func.func @transform_4(%arg0: i32) -> (i32, i32) {
    %c0_i32 = arith.constant 0 : i32
    %c0_i32_0 = arith.constant 0 : i32
    %c0_i32_1 = arith.constant 0 : i32
    return %c0_i32, %c0_i32_0 : i32, i32
  }
  func.func @transform_5(%arg0: i32) -> (i32, i32) {
    %c0_i32 = arith.constant 0 : i32
    %c0_i32_0 = arith.constant 0 : i32
    %c0_i32_1 = arith.constant 0 : i32
    return %c0_i32, %c0_i32_0 : i32, i32
  }
  func.func @transform_6(%arg0: i32) -> (i32, i32) {
    %c0_i32 = arith.constant 0 : i32
    %c0_i32_0 = arith.constant 0 : i32
    %c0_i32_1 = arith.constant 0 : i32
    return %c0_i32, %c0_i32_0 : i32, i32
  }
  func.func @transform_7(%arg0: i32) -> (i32, i32) {
    %c0_i32 = arith.constant 0 : i32
    %c0_i32_0 = arith.constant 0 : i32
    %c0_i32_1 = arith.constant 0 : i32
    return %c0_i32, %c0_i32_0 : i32, i32
  }
  func.func @transform_8(%arg0: i32) -> (i32, i32) {
    %c0_i32 = arith.constant 0 : i32
    %c0_i32_0 = arith.constant 0 : i32
    %c0_i32_1 = arith.constant 0 : i32
    return %c0_i32, %c0_i32_0 : i32, i32
  }
  func.func @transform_9(%arg0: i32) -> (i32, i32) {
    %c0_i32 = arith.constant 0 : i32
    %c0_i32_0 = arith.constant 0 : i32
    return %arg0, %c0_i32 : i32, i32
  }
  func.func @transform_10(%arg0: i32) -> (i32, i32) {
    %c0_i32 = arith.constant 0 : i32
    %c0_i32_0 = arith.constant 0 : i32
    return %arg0, %c0_i32 : i32, i32
  }
  func.func @transform_11(%arg0: i32) -> (i32, i32) {
    %c0_i32 = arith.constant 0 : i32
    %c0_i32_0 = arith.constant 0 : i32
    return %arg0, %c0_i32 : i32, i32
  }
}

</mosaic_0001>

<llo_original>
// kernel: tpu_custom_call.1
$region0: #{tpu_custom_call.1}
  #allocation0 [shape = 'u32[]', space=smem, size = 0x4, offset = 0x4, fixed_abs, tag = 'smem constant byte address 0x4 - core index']
  #allocation1 [shape = 'u32[144,128]{1,0:T(1,128)}', space=vmem, size = 0x12000, scoped, tag = 'internal scratch']
  %s0 = inlined_call_operand.hbm [shape: f32[256,256], index: 0, kind: input, shape index: {}]
  %s1 = inlined_call_operand.hbm [shape: f32[256,256], index: 1, kind: input, shape index: {}]
  %s2 = inlined_call_operand.hbm [shape: f32[256,256], index: 2, kind: input, shape index: {}]
  %s3 = inlined_call_operand.hbm [shape: bf16[256,256], index: 3, kind: input, shape index: {}]
  %s4 = inlined_call_operand.hbm [shape: bf16[256,256], index: 4, kind: input, shape index: {}]
  %s5 = inlined_call_operand.hbm [shape: bf16[256,256], index: 5, kind: input, shape index: {}]
  %s6 = inlined_call_operand.vmem [shape: f32[1,256], index: 6, kind: input, shape index: {}]
  %s7 = inlined_call_operand.vmem [shape: f32[1,256], index: 7, kind: input, shape index: {}]
  %s8 = inlined_call_operand.vmem [shape: f32[1,256], index: 8, kind: input, shape index: {}]
  %s9 = inlined_call_operand.hbm [shape: bf16[256,256], index: 9, kind: output, shape index: {0}]
  %s10 = inlined_call_operand.hbm [shape: bf16[256,256], index: 10, kind: output, shape index: {1}]
  %s11 = inlined_call_operand.hbm [shape: bf16[256,256], index: 11, kind: output, shape index: {2}]
  %12 = xla_tuple %s9, %s10, %s11
  %s13 = sld [smem:[#allocation0]]
  $region86: #{tpu_custom_call.1} parent=0
    _
  %s15 = ssub.s32 1, %s13
  %s16 = scalar_select 0, %s15, %s13
  $region1: #{tpu_custom_call.1} parent=0
    #allocation2 [shape = 'u8[262144]{0}', space=vmem, size = 0x40000, scoped, tag = 'input window, operand 0, single buffered']
    #allocation3 [shape = 's32[1]{0}', space=sflag, size = 0x4, scoped, tag = 'scoped memory for tpu_custom_call.1']
    #allocation4 [shape = 's32[1]{0}', space=sflag, size = 0x4, scoped, tag = 'scoped memory for tpu_custom_call.1']
    #allocation5 [shape = 'u8[262144]{0}', space=vmem, size = 0x40000, scoped, tag = 'input window, operand 1, single buffered']
    #allocation6 [shape = 's32[1]{0}', space=sflag, size = 0x4, scoped, tag = 'scoped memory for tpu_custom_call.1']
    #allocation7 [shape = 'u8[262144]{0}', space=vmem, size = 0x40000, scoped, tag = 'input window, operand 2, single buffered']
    #allocation8 [shape = 'u8[131072]{0}', space=vmem, size = 0x20000, scoped, tag = 'input window, operand 3, single buffered']
    #allocation9 [shape = 's32[1]{0}', space=sflag, size = 0x4, scoped, tag = 'scoped memory for tpu_custom_call.1']
    #allocation10 [shape = 'u8[131072]{0}', space=vmem, size = 0x20000, scoped, tag = 'input window, operand 4, single buffered']
    #allocation11 [shape = 'u8[131072]{0}', space=vmem, size = 0x20000, scoped, tag = 'input window, operand 5, single buffered']
    #allocation12 [shape = 's32[1]{0}', space=sflag, size = 0x4, scoped, tag = 'scoped memory for tpu_custom_call.1']
    #allocation13 [shape = 'u8[131072]{0}', space=vmem, size = 0x20000, scoped, tag = 'output window, operand 0, single buffered']
    #allocation14 [shape = 'u8[131072]{0}', space=vmem, size = 0x20000, scoped, tag = 'output window, operand 1, single buffered']
    #allocation15 [shape = 's32[1]{0}', space=sflag, size = 0x4, scoped, tag = 'scoped memory for tpu_custom_call.1']
    #allocation16 [shape = 'u8[131072]{0}', space=vmem, size = 0x20000, scoped, tag = 'output window, operand 2, single buffered']
    %17 = vsyncpa [#allocation3], 0
    %18 = vsyncpa [#allocation6], 0
    %19 = vsyncpa [#allocation9], 0
    %20 = vsyncpa [#allocation12], 0
    %21 = vsyncpa [#allocation4], 0
    %22 = vsyncpa [#allocation15], 0
    // Predicated region
    $region2: #{tpu_custom_call.1} parent=1 // pred_check
      _
    $region3: #{tpu_custom_call.1} parent=1 // pred_check_branch
      %24 = sbr.rel (0) target = $region5
    $region4: #{tpu_custom_call.1} parent=1 // pred_region
      %s26 = ssub.s32 8192, 8192
      %27 = vsyncadd [#allocation3], %s26
      %s28 = sshll.u32 [#allocation2], 4
      %s29 = int_to_ptr.vmem [resolvable:$true] %s28
      %34 = dma.hbm_to_vmem [thread:$0]  %s0, 8192, %s29, [#allocation3], 256, 256, 16
    $region5: #{tpu_custom_call.1} parent=1 // pred_fallthru
      _
    // Predicated region
    $region6: #{tpu_custom_call.1} parent=1 // pred_check
      _
    $region7: #{tpu_custom_call.1} parent=1 // pred_check_branch
      %36 = sbr.rel (0) target = $region9
    $region8: #{tpu_custom_call.1} parent=1 // pred_region
      %s38 = ssub.s32 8192, 8192
      %39 = vsyncadd [#allocation6], %s38
      %s40 = sshll.u32 [#allocation5], 4
      %s41 = int_to_ptr.vmem [resolvable:$true] %s40
      %46 = dma.hbm_to_vmem [thread:$0]  %s1, 8192, %s41, [#allocation6], 256, 256, 16
    $region9: #{tpu_custom_call.1} parent=1 // pred_fallthru
      _
    // Predicated region
    $region10: #{tpu_custom_call.1} parent=1 // pred_check
      _
    $region11: #{tpu_custom_call.1} parent=1 // pred_check_branch
      %48 = sbr.rel (0) target = $region13
    $region12: #{tpu_custom_call.1} parent=1 // pred_region
      %s50 = ssub.s32 8192, 8192
      %51 = vsyncadd [#allocation6], %s50
      %s52 = sshll.u32 [#allocation7], 4
      %s53 = int_to_ptr.vmem [resolvable:$true] %s52
      %58 = dma.hbm_to_vmem [thread:$0]  %s2, 8192, %s53, [#allocation6], 256, 256, 16
    $region13: #{tpu_custom_call.1} parent=1 // pred_fallthru
      _
    // Predicated region
    $region14: #{tpu_custom_call.1} parent=1 // pred_check
      _
    $region15: #{tpu_custom_call.1} parent=1 // pred_check_branch
      %60 = sbr.rel (0) target = $region17
    $region16: #{tpu_custom_call.1} parent=1 // pred_region
      %s62 = ssub.s32 4096, 4096
      %63 = vsyncadd [#allocation9], %s62
      %s64 = sshll.u32 [#allocation8], 4
      %s65 = int_to_ptr.vmem [resolvable:$true] %s64
      %70 = dma.hbm_to_vmem [thread:$0]  %s3, 4096, %s65, [#allocation9], 128, 128, 8
    $region17: #{tpu_custom_call.1} parent=1 // pred_fallthru
      _
    // Predicated region
    $region18: #{tpu_custom_call.1} parent=1 // pred_check
      _
    $region19: #{tpu_custom_call.1} parent=1 // pred_check_branch
      %72 = sbr.rel (0) target = $region21
    $region20: #{tpu_custom_call.1} parent=1 // pred_region
      %s74 = ssub.s32 4096, 4096
      %75 = vsyncadd [#allocation9], %s74
      %s76 = sshll.u32 [#allocation10], 4
      %s77 = int_to_ptr.vmem [resolvable:$true] %s76
      %82 = dma.hbm_to_vmem [thread:$0]  %s4, 4096, %s77, [#allocation9], 128, 128, 8
    $region21: #{tpu_custom_call.1} parent=1 // pred_fallthru
      _
    // Predicated region
    $region22: #{tpu_custom_call.1} parent=1 // pred_check
      _
    $region23: #{tpu_custom_call.1} parent=1 // pred_check_branch
      %84 = sbr.rel (0) target = $region25
    $region24: #{tpu_custom_call.1} parent=1 // pred_region
      %s86 = ssub.s32 4096, 4096
      %87 = vsyncadd [#allocation12], %s86
      %s88 = sshll.u32 [#allocation11], 4
      %s89 = int_to_ptr.vmem [resolvable:$true] %s88
      %94 = dma.hbm_to_vmem [thread:$0]  %s5, 4096, %s89, [#allocation12], 128, 128, 8
    $region25: #{tpu_custom_call.1} parent=1 // pred_fallthru
      _
    // Predicated region
    $region26: #{tpu_custom_call.1} parent=1 // pred_check
      _
    $region27: #{tpu_custom_call.1} parent=1 // pred_check_branch
      %96 = sbr.rel (0) target = $region29
    $region28: #{tpu_custom_call.1} parent=1 // pred_region
      _
    $region29: #{tpu_custom_call.1} parent=1 // pred_fallthru
      _
    // Predicated region
    $region30: #{tpu_custom_call.1} parent=1 // pred_check
      _
    $region31: #{tpu_custom_call.1} parent=1 // pred_check_branch
      %98 = sbr.rel (0) target = $region33
    $region32: #{tpu_custom_call.1} parent=1 // pred_region
      _
    $region33: #{tpu_custom_call.1} parent=1 // pred_fallthru
      _
    // Predicated region
    $region34: #{tpu_custom_call.1} parent=1 // pred_check
      _
    $region35: #{tpu_custom_call.1} parent=1 // pred_check_branch
      %100 = sbr.rel (0) target = $region37
    $region36: #{tpu_custom_call.1} parent=1 // pred_region
      _
    $region37: #{tpu_custom_call.1} parent=1 // pred_fallthru
      _
    // Predicated region
    $region38: #{tpu_custom_call.1} parent=1 // pred_check
      _
    $region39: #{tpu_custom_call.1} parent=1 // pred_check_branch
      %102 = sbr.rel (0) target = $region41
    $region40: #{tpu_custom_call.1} parent=1 // pred_region
      %103 = dma.done [#allocation3], 8192
    $region41: #{tpu_custom_call.1} parent=1 // pred_fallthru
      _
    // Predicated region
    $region42: #{tpu_custom_call.1} parent=1 // pred_check
      _
    $region43: #{tpu_custom_call.1} parent=1 // pred_check_branch
      %105 = sbr.rel (0) target = $region45
    $region44: #{tpu_custom_call.1} parent=1 // pred_region
      %106 = dma.done [#allocation6], 8192
    $region45: #{tpu_custom_call.1} parent=1 // pred_fallthru
      _
    // Predicated region
    $region46: #{tpu_custom_call.1} parent=1 // pred_check
      _
    $region47: #{tpu_custom_call.1} parent=1 // pred_check_branch
      %108 = sbr.rel (0) target = $region49
    $region48: #{tpu_custom_call.1} parent=1 // pred_region
      %109 = dma.done [#allocation6], 8192
    $region49: #{tpu_custom_call.1} parent=1 // pred_fallthru
      _
    // Predicated region
    $region50: #{tpu_custom_call.1} parent=1 // pred_check
      _
    $region51: #{tpu_custom_call.1} parent=1 // pred_check_branch
      %111 = sbr.rel (0) target = $region53
    $region52: #{tpu_custom_call.1} parent=1 // pred_region
      %112 = dma.done [#allocation9], 4096
    $region53: #{tpu_custom_call.1} parent=1 // pred_fallthru
      _
    // Predicated region
    $region54: #{tpu_custom_call.1} parent=1 // pred_check
      _
    $region55: #{tpu_custom_call.1} parent=1 // pred_check_branch
      %114 = sbr.rel (0) target = $region57
    $region56: #{tpu_custom_call.1} parent=1 // pred_region
      %115 = dma.done [#allocation9], 4096
    $region57: #{tpu_custom_call.1} parent=1 // pred_fallthru
      _
    // Predicated region
    $region58: #{tpu_custom_call.1} parent=1 // pred_check
      _
    $region59: #{tpu_custom_call.1} parent=1 // pred_check_branch
      %117 = sbr.rel (0) target = $region61
    $region60: #{tpu_custom_call.1} parent=1 // pred_region
      %118 = dma.done [#allocation12], 4096
    $region61: #{tpu_custom_call.1} parent=1 // pred_fallthru
      _
    %v119 = vld [vmem:[#allocation2] sm:$0xff]
    %v120 = vld [vmem:[#allocation2 + $0x8] sm:$0xff]
    %v121 = vld [vmem:[#allocation2 + $0x10] sm:$0xff]
    %v122 = vld [vmem:[#allocation2 + $0x18] sm:$0xff]
    %v123 = vld [vmem:[#allocation2 + $0x20] sm:$0xff]
    %v124 = vld [vmem:[#allocation2 + $0x28] sm:$0xff]
    %v125 = vld [vmem:[#allocation2 + $0x30] sm:$0xff]
    %v126 = vld [vmem:[#allocation2 + $0x38] sm:$0xff]
    %v127 = vld [vmem:[#allocation2 + $0x40] sm:$0xff]
    %v128 = vld [vmem:[#allocation2 + $0x48] sm:$0xff]
    %v129 = vld [vmem:[#allocation2 + $0x50] sm:$0xff]
    %v130 = vld [vmem:[#allocation2 + $0x58] sm:$0xff]
    %v131 = vld [vmem:[#allocation2 + $0x60] sm:$0xff]
    %v132 = vld [vmem:[#allocation2 + $0x68] sm:$0xff]
    %v133 = vld [vmem:[#allocation2 + $0x70] sm:$0xff]
    %v134 = vld [vmem:[#allocation2 + $0x78] sm:$0xff]
    %v135 = vld [vmem:[#allocation2 + $0x80] sm:$0xff]
    %v136 = vld [vmem:[#allocation2 + $0x88] sm:$0xff]
    %v137 = vld [vmem:[#allocation2 + $0x90] sm:$0xff]
    %v138 = vld [vmem:[#allocation2 + $0x98] sm:$0xff]
    %v139 = vld [vmem:[#allocation2 + $0xa0] sm:$0xff]
    %v140 = vld [vmem:[#allocation2 + $0xa8] sm:$0xff]
    %v141 = vld [vmem:[#allocation2 + $0xb0] sm:$0xff]
    %v142 = vld [vmem:[#allocation2 + $0xb8] sm:$0xff]
    %v143 = vld [vmem:[#allocation2 + $0xc0] sm:$0xff]
    %v144 = vld [vmem:[#allocation2 + $0xc8] sm:$0xff]
    %v145 = vld [vmem:[#allocation2 + $0xd0] sm:$0xff]
    %v146 = vld [vmem:[#allocation2 + $0xd8] sm:$0xff]
    %v147 = vld [vmem:[#allocation2 + $0xe0] sm:$0xff]
    %v148 = vld [vmem:[#allocation2 + $0xe8] sm:$0xff]
    %v149 = vld [vmem:[#allocation2 + $0xf0] sm:$0xff]
    %v150 = vld [vmem:[#allocation2 + $0xf8] sm:$0xff]
    %v151 = vld [vmem:[#allocation2 + $0x100] sm:$0xff]
    %v152 = vld [vmem:[#allocation2 + $0x108] sm:$0xff]
    %v153 = vld [vmem:[#allocation2 + $0x110] sm:$0xff]
    %v154 = vld [vmem:[#allocation2 + $0x118] sm:$0xff]
    %v155 = vld [vmem:[#allocation2 + $0x120] sm:$0xff]
    %v156 = vld [vmem:[#allocation2 + $0x128] sm:$0xff]
    %v157 = vld [vmem:[#allocation2 + $0x130] sm:$0xff]
    %v158 = vld [vmem:[#allocation2 + $0x138] sm:$0xff]
    %v159 = vld [vmem:[#allocation2 + $0x140] sm:$0xff]
    %v160 = vld [vmem:[#allocation2 + $0x148] sm:$0xff]
    %v161 = vld [vmem:[#allocation2 + $0x150] sm:$0xff]
    %v162 = vld [vmem:[#allocation2 + $0x158] sm:$0xff]
    %v163 = vld [vmem:[#allocation2 + $0x160] sm:$0xff]
    %v164 = vld [vmem:[#allocation2 + $0x168] sm:$0xff]
    %v165 = vld [vmem:[#allocation2 + $0x170] sm:$0xff]
    %v166 = vld [vmem:[#allocation2 + $0x178] sm:$0xff]
    %v167 = vld [vmem:[#allocation2 + $0x180] sm:$0xff]
    %v168 = vld [vmem:[#allocation2 + $0x188] sm:$0xff]
    %v169 = vld [vmem:[#allocation2 + $0x190] sm:$0xff]
    %v170 = vld [vmem:[#allocation2 + $0x198] sm:$0xff]
    %v171 = vld [vmem:[#allocation2 + $0x1a0] sm:$0xff]
    %v172 = vld [vmem:[#allocation2 + $0x1a8] sm:$0xff]
    %v173 = vld [vmem:[#allocation2 + $0x1b0] sm:$0xff]
    %v174 = vld [vmem:[#allocation2 + $0x1b8] sm:$0xff]
    %v175 = vld [vmem:[#allocation2 + $0x1c0] sm:$0xff]
    %v176 = vld [vmem:[#allocation2 + $0x1c8] sm:$0xff]
    %v177 = vld [vmem:[#allocation2 + $0x1d0] sm:$0xff]
    %v178 = vld [vmem:[#allocation2 + $0x1d8] sm:$0xff]
    %v179 = vld [vmem:[#allocation2 + $0x1e0] sm:$0xff]
    %v180 = vld [vmem:[#allocation2 + $0x1e8] sm:$0xff]
    %v181 = vld [vmem:[#allocation2 + $0x1f0] sm:$0xff]
    %v182 = vld [vmem:[#allocation2 + $0x1f8] sm:$0xff]
    %v183 = vpack.c.bf16 %v121, %v119
    %v184 = vpack.c.bf16 %v122, %v120
    %v185 = vpack.c.bf16 %v125, %v123
    %v186 = vpack.c.bf16 %v126, %v124
    %v187 = vpack.c.bf16 %v129, %v127
    %v188 = vpack.c.bf16 %v130, %v128
    %v189 = vpack.c.bf16 %v133, %v131
    %v190 = vpack.c.bf16 %v134, %v132
    %v191 = vpack.c.bf16 %v137, %v135
    %v192 = vpack.c.bf16 %v138, %v136
    %v193 = vpack.c.bf16 %v141, %v139
    %v194 = vpack.c.bf16 %v142, %v140
    %v195 = vpack.c.bf16 %v145, %v143
    %v196 = vpack.c.bf16 %v146, %v144
    %v197 = vpack.c.bf16 %v149, %v147
    %v198 = vpack.c.bf16 %v150, %v148
    %v199 = vpack.c.bf16 %v153, %v151
    %v200 = vpack.c.bf16 %v154, %v152
    %v201 = vpack.c.bf16 %v157, %v155
    %v202 = vpack.c.bf16 %v158, %v156
    %v203 = vpack.c.bf16 %v161, %v159
    %v204 = vpack.c.bf16 %v162, %v160
    %v205 = vpack.c.bf16 %v165, %v163
    %v206 = vpack.c.bf16 %v166, %v164
    %v207 = vpack.c.bf16 %v169, %v167
    %v208 = vpack.c.bf16 %v170, %v168
    %v209 = vpack.c.bf16 %v173, %v171
    %v210 = vpack.c.bf16 %v174, %v172
    %v211 = vpack.c.bf16 %v177, %v175
    %v212 = vpack.c.bf16 %v178, %v176
    %v213 = vpack.c.bf16 %v181, %v179
    %v214 = vpack.c.bf16 %v182, %v180
    %v215 = vld [vmem:[#allocation8] sm:$0xff]
    %v216 = vld [vmem:[#allocation8 + $0x8] sm:$0xff]
    %v217 = vld [vmem:[#allocation8 + $0x10] sm:$0xff]
    %v218 = vld [vmem:[#allocation8 + $0x18] sm:$0xff]
    %v219 = vld [vmem:[#allocation8 + $0x20] sm:$0xff]
    %v220 = vld [vmem:[#allocation8 + $0x28] sm:$0xff]
    %v221 = vld [vmem:[#allocation8 + $0x30] sm:$0xff]
    %v222 = vld [vmem:[#allocation8 + $0x38] sm:$0xff]
    %v223 = vld [vmem:[#allocation8 + $0x40] sm:$0xff]
    %v224 = vld [vmem:[#allocation8 + $0x48] sm:$0xff]
    %v225 = vld [vmem:[#allocation8 + $0x50] sm:$0xff]
    %v226 = vld [vmem:[#allocation8 + $0x58] sm:$0xff]
    %v227 = vld [vmem:[#allocation8 + $0x60] sm:$0xff]
    %v228 = vld [vmem:[#allocation8 + $0x68] sm:$0xff]
    %v229 = vld [vmem:[#allocation8 + $0x70] sm:$0xff]
    %v230 = vld [vmem:[#allocation8 + $0x78] sm:$0xff]
    %v231 = vld [vmem:[#allocation8 + $0x80] sm:$0xff]
    %v232 = vld [vmem:[#allocation8 + $0x88] sm:$0xff]
    %v233 = vld [vmem:[#allocation8 + $0x90] sm:$0xff]
    %v234 = vld [vmem:[#allocation8 + $0x98] sm:$0xff]
    %v235 = vld [vmem:[#allocation8 + $0xa0] sm:$0xff]
    %v236 = vld [vmem:[#allocation8 + $0xa8] sm:$0xff]
    %v237 = vld [vmem:[#allocation8 + $0xb0] sm:$0xff]
    %v238 = vld [vmem:[#allocation8 + $0xb8] sm:$0xff]
    %v239 = vld [vmem:[#allocation8 + $0xc0] sm:$0xff]
    %v240 = vld [vmem:[#allocation8 + $0xc8] sm:$0xff]
    %v241 = vld [vmem:[#allocation8 + $0xd0] sm:$0xff]
    %v242 = vld [vmem:[#allocation8 + $0xd8] sm:$0xff]
    %v243 = vld [vmem:[#allocation8 + $0xe0] sm:$0xff]
    %v244 = vld [vmem:[#allocation8 + $0xe8] sm:$0xff]
    %v245 = vld [vmem:[#allocation8 + $0xf0] sm:$0xff]
    %v246 = vld [vmem:[#allocation8 + $0xf8] sm:$0xff]
    %v247 = vld [vmem:[%s6] sm:$0x3]
    %v249 = vlaneseq
    %v250 = vshrl.u32 %v249, 7
    %v251 = vsub.s32 0, %v250
    %v252 = vrot.slane %v247, %v251
    %v253 = vlaneseq
    %v254 = vshrl.u32 %v253, 7
    %v255 = vsub.s32 1, %v254
    %v256 = vrot.slane %v247, %v255
    %v291 = vunpack.c.l.b16 %v215
    %v292 = vunpack.c.h.b16 %v215
    %v293 = vunpack.c.l.b16 %v216
    %v294 = vunpack.c.h.b16 %v216
    %v295 = vunpack.c.l.b16 %v217
    %v296 = vunpack.c.h.b16 %v217
    %v297 = vunpack.c.l.b16 %v218
    %v298 = vunpack.c.h.b16 %v218
    %v299 = vunpack.c.l.b16 %v219
    %v300 = vunpack.c.h.b16 %v219
    %v301 = vunpack.c.l.b16 %v220
    %v302 = vunpack.c.h.b16 %v220
    %v303 = vunpack.c.l.b16 %v221
    %v304 = vunpack.c.h.b16 %v221
    %v305 = vunpack.c.l.b16 %v222
    %v306 = vunpack.c.h.b16 %v222
    %v307 = vunpack.c.l.b16 %v223
    %v308 = vunpack.c.h.b16 %v223
    %v309 = vunpack.c.l.b16 %v224
    %v310 = vunpack.c.h.b16 %v224
    %v311 = vunpack.c.l.b16 %v225
    %v312 = vunpack.c.h.b16 %v225
    %v313 = vunpack.c.l.b16 %v226
    %v314 = vunpack.c.h.b16 %v226
    %v315 = vunpack.c.l.b16 %v227
    %v316 = vunpack.c.h.b16 %v227
    %v317 = vunpack.c.l.b16 %v228
    %v318 = vunpack.c.h.b16 %v228
    %v319 = vunpack.c.l.b16 %v229
    %v320 = vunpack.c.h.b16 %v229
    %v321 = vunpack.c.l.b16 %v230
    %v322 = vunpack.c.h.b16 %v230
    %v323 = vunpack.c.l.b16 %v231
    %v324 = vunpack.c.h.b16 %v231
    %v325 = vunpack.c.l.b16 %v232
    %v326 = vunpack.c.h.b16 %v232
    %v327 = vunpack.c.l.b16 %v233
    %v328 = vunpack.c.h.b16 %v233
    %v329 = vunpack.c.l.b16 %v234
    %v330 = vunpack.c.h.b16 %v234
    %v331 = vunpack.c.l.b16 %v235
    %v332 = vunpack.c.h.b16 %v235
    %v333 = vunpack.c.l.b16 %v236
    %v334 = vunpack.c.h.b16 %v236
    %v335 = vunpack.c.l.b16 %v237
    %v336 = vunpack.c.h.b16 %v237
    %v337 = vunpack.c.l.b16 %v238
    %v338 = vunpack.c.h.b16 %v238
    %v339 = vunpack.c.l.b16 %v239
    %v340 = vunpack.c.h.b16 %v239
    %v341 = vunpack.c.l.b16 %v240
    %v342 = vunpack.c.h.b16 %v240
    %v343 = vunpack.c.l.b16 %v241
    %v344 = vunpack.c.h.b16 %v241
    %v345 = vunpack.c.l.b16 %v242
    %v346 = vunpack.c.h.b16 %v242
    %v347 = vunpack.c.l.b16 %v243
    %v348 = vunpack.c.h.b16 %v243
    %v349 = vunpack.c.l.b16 %v244
    %v350 = vunpack.c.h.b16 %v244
    %v351 = vunpack.c.l.b16 %v245
    %v352 = vunpack.c.h.b16 %v245
    %v353 = vunpack.c.l.b16 %v246
    %v354 = vunpack.c.h.b16 %v246
    %v355 = vpack.c.b16 %v293, %v291
    %v356 = vpack.c.b16 %v294, %v292
    %v357 = vpack.c.b16 %v297, %v295
    %v358 = vpack.c.b16 %v298, %v296
    %v359 = vpack.c.b16 %v301, %v299
    %v360 = vpack.c.b16 %v302, %v300
    %v361 = vpack.c.b16 %v305, %v303
    %v362 = vpack.c.b16 %v306, %v304
    %v363 = vpack.c.b16 %v309, %v307
    %v364 = vpack.c.b16 %v310, %v308
    %v365 = vpack.c.b16 %v313, %v311
    %v366 = vpack.c.b16 %v314, %v312
    %v367 = vpack.c.b16 %v317, %v315
    %v368 = vpack.c.b16 %v318, %v316
    %v369 = vpack.c.b16 %v321, %v319
    %v370 = vpack.c.b16 %v322, %v320
    %v371 = vpack.c.b16 %v325, %v323
    %v372 = vpack.c.b16 %v326, %v324
    %v373 = vpack.c.b16 %v329, %v327
    %v374 = vpack.c.b16 %v330, %v328
    %v375 = vpack.c.b16 %v333, %v331
    %v376 = vpack.c.b16 %v334, %v332
    %v377 = vpack.c.b16 %v337, %v335
    %v378 = vpack.c.b16 %v338, %v336
    %v379 = vpack.c.b16 %v341, %v339
    %v380 = vpack.c.b16 %v342, %v340
    %v381 = vpack.c.b16 %v345, %v343
    %v382 = vpack.c.b16 %v346, %v344
    %v383 = vpack.c.b16 %v349, %v347
    %v384 = vpack.c.b16 %v350, %v348
    %v385 = vpack.c.b16 %v353, %v351
    %v386 = vpack.c.b16 %v354, %v352
    %419 = vmatprep.subr.bf16.mxu0 %v356
    %420 = vmatpush1.bf16.msra.mxu0 %v355
    %421 = vmatprep.subr.bf16.mxu0 %v358
    %422 = vmatpush1.bf16.msra.mxu0 %v357
    %423 = vmatprep.subr.bf16.mxu0 %v360
    %424 = vmatpush1.bf16.msra.mxu0 %v359
    %425 = vmatprep.subr.bf16.mxu0 %v362
    %426 = vmatpush1.bf16.msra.mxu0 %v361
    %427 = vmatprep.subr.bf16.mxu0 %v364
    %428 = vmatpush1.bf16.msra.mxu0 %v363
    %429 = vmatprep.subr.bf16.mxu0 %v366
    %430 = vmatpush1.bf16.msra.mxu0 %v365
    %431 = vmatprep.subr.bf16.mxu0 %v368
    %432 = vmatpush1.bf16.msra.mxu0 %v367
    %433 = vmatprep.subr.bf16.mxu0 %v370
    %434 = vmatpush1.bf16.msra.mxu0 %v369
    %435 = vmatprep.subr.bf16.mxu0 %v372
    %436 = vmatpush1.bf16.msra.mxu0 %v371
    %437 = vmatprep.subr.bf16.mxu0 %v374
    %438 = vmatpush1.bf16.msra.mxu0 %v373
    %439 = vmatprep.subr.bf16.mxu0 %v376
    %440 = vmatpush1.bf16.msra.mxu0 %v375
    %441 = vmatprep.subr.bf16.mxu0 %v378
    %442 = vmatpush1.bf16.msra.mxu0 %v377
    %443 = vmatprep.subr.bf16.mxu0 %v380
    %444 = vmatpush1.bf16.msra.mxu0 %v379
    %445 = vmatprep.subr.bf16.mxu0 %v382
    %446 = vmatpush1.bf16.msra.mxu0 %v381
    %447 = vmatprep.subr.bf16.mxu0 %v384
    %448 = vmatpush1.bf16.msra.mxu0 %v383
    %449 = vmatprep.subr.bf16.mxu0 %v386
    %450 = vmatpush1.bf16.msra.mxu0 %v385
    %451 = vmatprep.mubr.bf16.mxu0 %v184
    %452 = vmatmul.mubr.bf16.gmra.mrb[0].mxu0 %v183
    %v453 = vpop.f32.mrb[0].mxu0
    %v454 = vadd.f32 %v252, %v453
    %v455 = vpop.f32.mrb[0].mxu0
    %v456 = vadd.f32 %v256, %v455
    %v457 = vpop.f32.mrb[0].mxu0
    %v458 = vadd.f32 %v252, %v457
    %v459 = vpop.f32.mrb[0].mxu0
    %v460 = vadd.f32 %v256, %v459
    %461 = vmatprep.mubr.bf16.mxu0 %v186
    %462 = vmatmul.mubr.bf16.gmra.mrb[0].mxu0 %v185
    %v463 = vpop.f32.mrb[0].mxu0
    %v464 = vadd.f32 %v252, %v463
    %v465 = vpop.f32.mrb[0].mxu0
    %v466 = vadd.f32 %v256, %v465
    %v467 = vpop.f32.mrb[0].mxu0
    %v468 = vadd.f32 %v252, %v467
    %v469 = vpop.f32.mrb[0].mxu0
    %v470 = vadd.f32 %v256, %v469
    %471 = vmatprep.mubr.bf16.mxu0 %v188
    %472 = vmatmul.mubr.bf16.gmra.mrb[0].mxu0 %v187
    %v473 = vpop.f32.mrb[0].mxu0
    %v474 = vadd.f32 %v252, %v473
    %v475 = vpop.f32.mrb[0].mxu0
    %v476 = vadd.f32 %v256, %v475
    %v477 = vpop.f32.mrb[0].mxu0
    %v478 = vadd.f32 %v252, %v477
    %v479 = vpop.f32.mrb[0].mxu0
    %v480 = vadd.f32 %v256, %v479
    %481 = vmatprep.mubr.bf16.mxu0 %v190
    %482 = vmatmul.mubr.bf16.gmra.mrb[0].mxu0 %v189
    %v483 = vpop.f32.mrb[0].mxu0
    %v484 = vadd.f32 %v252, %v483
    %v485 = vpop.f32.mrb[0].mxu0
    %v486 = vadd.f32 %v256, %v485
    %v487 = vpop.f32.mrb[0].mxu0
    %v488 = vadd.f32 %v252, %v487
    %v489 = vpop.f32.mrb[0].mxu0
    %v490 = vadd.f32 %v256, %v489
    %491 = vmatprep.mubr.bf16.mxu0 %v192
    %492 = vmatmul.mubr.bf16.gmra.mrb[0].mxu0 %v191
    %v493 = vpop.f32.mrb[0].mxu0
    %v494 = vadd.f32 %v252, %v493
    %v495 = vpop.f32.mrb[0].mxu0
    %v496 = vadd.f32 %v256, %v495
    %v497 = vpop.f32.mrb[0].mxu0
    %v498 = vadd.f32 %v252, %v497
    %v499 = vpop.f32.mrb[0].mxu0
    %v500 = vadd.f32 %v256, %v499
    %501 = vmatprep.mubr.bf16.mxu0 %v194
    %502 = vmatmul.mubr.bf16.gmra.mrb[0].mxu0 %v193
    %v503 = vpop.f32.mrb[0].mxu0
    %v504 = vadd.f32 %v252, %v503
    %v505 = vpop.f32.mrb[0].mxu0
    %v506 = vadd.f32 %v256, %v505
    %v507 = vpop.f32.mrb[0].mxu0
    %v508 = vadd.f32 %v252, %v507
    %v509 = vpop.f32.mrb[0].mxu0
    %v510 = vadd.f32 %v256, %v509
    %511 = vmatprep.mubr.bf16.mxu0 %v196
    %512 = vmatmul.mubr.bf16.gmra.mrb[0].mxu0 %v195
    %v513 = vpop.f32.mrb[0].mxu0
    %v514 = vadd.f32 %v252, %v513
    %v515 = vpop.f32.mrb[0].mxu0
    %v516 = vadd.f32 %v256, %v515
    %v517 = vpop.f32.mrb[0].mxu0
    %v518 = vadd.f32 %v252, %v517
    %v519 = vpop.f32.mrb[0].mxu0
    %v520 = vadd.f32 %v256, %v519
    %521 = vmatprep.mubr.bf16.mxu0 %v198
    %522 = vmatmul.mubr.bf16.gmra.mrb[0].mxu0 %v197
    %v523 = vpop.f32.mrb[0].mxu0
    %v524 = vadd.f32 %v252, %v523
    %v525 = vpop.f32.mrb[0].mxu0
    %v526 = vadd.f32 %v256, %v525
    %v527 = vpop.f32.mrb[0].mxu0
    %v528 = vadd.f32 %v252, %v527
    %v529 = vpop.f32.mrb[0].mxu0
    %v530 = vadd.f32 %v256, %v529
    %531 = vmatprep.mubr.bf16.mxu0 %v200
    %532 = vmatmul.mubr.bf16.gmra.mrb[0].mxu0 %v199
    %v533 = vpop.f32.mrb[0].mxu0
    %v534 = vadd.f32 %v252, %v533
    %v535 = vpop.f32.mrb[0].mxu0
    %v536 = vadd.f32 %v256, %v535
    %v537 = vpop.f32.mrb[0].mxu0
    %v538 = vadd.f32 %v252, %v537
    %v539 = vpop.f32.mrb[0].mxu0
    %v540 = vadd.f32 %v256, %v539
    %541 = vmatprep.mubr.bf16.mxu0 %v202
    %542 = vmatmul.mubr.bf16.gmra.mrb[0].mxu0 %v201
    %v543 = vpop.f32.mrb[0].mxu0
    %v544 = vadd.f32 %v252, %v543
    %v545 = vpop.f32.mrb[0].mxu0
    %v546 = vadd.f32 %v256, %v545
    %v547 = vpop.f32.mrb[0].mxu0
    %v548 = vadd.f32 %v252, %v547
    %v549 = vpop.f32.mrb[0].mxu0
    %v550 = vadd.f32 %v256, %v549
    %551 = vmatprep.mubr.bf16.mxu0 %v204
    %552 = vmatmul.mubr.bf16.gmra.mrb[0].mxu0 %v203
    %v553 = vpop.f32.mrb[0].mxu0
    %v554 = vadd.f32 %v252, %v553
    %v555 = vpop.f32.mrb[0].mxu0
    %v556 = vadd.f32 %v256, %v555
    %v557 = vpop.f32.mrb[0].mxu0
    %v558 = vadd.f32 %v252, %v557
    %v559 = vpop.f32.mrb[0].mxu0
    %v560 = vadd.f32 %v256, %v559
    %561 = vmatprep.mubr.bf16.mxu0 %v206
    %562 = vmatmul.mubr.bf16.gmra.mrb[0].mxu0 %v205
    %v563 = vpop.f32.mrb[0].mxu0
    %v564 = vadd.f32 %v252, %v563
    %v565 = vpop.f32.mrb[0].mxu0
    %v566 = vadd.f32 %v256, %v565
    %v567 = vpop.f32.mrb[0].mxu0
    %v568 = vadd.f32 %v252, %v567
    %v569 = vpop.f32.mrb[0].mxu0
    %v570 = vadd.f32 %v256, %v569
    %571 = vmatprep.mubr.bf16.mxu0 %v208
    %572 = vmatmul.mubr.bf16.gmra.mrb[0].mxu0 %v207
    %v573 = vpop.f32.mrb[0].mxu0
    %v574 = vadd.f32 %v252, %v573
    %v575 = vpop.f32.mrb[0].mxu0
    %v576 = vadd.f32 %v256, %v575
    %v577 = vpop.f32.mrb[0].mxu0
    %v578 = vadd.f32 %v252, %v577
    %v579 = vpop.f32.mrb[0].mxu0
    %v580 = vadd.f32 %v256, %v579
    %581 = vmatprep.mubr.bf16.mxu0 %v210
    %582 = vmatmul.mubr.bf16.gmra.mrb[0].mxu0 %v209
    %v583 = vpop.f32.mrb[0].mxu0
    %v584 = vadd.f32 %v252, %v583
    %v585 = vpop.f32.mrb[0].mxu0
    %v586 = vadd.f32 %v256, %v585
    %v587 = vpop.f32.mrb[0].mxu0
    %v588 = vadd.f32 %v252, %v587
    %v589 = vpop.f32.mrb[0].mxu0
    %v590 = vadd.f32 %v256, %v589
    %591 = vmatprep.mubr.bf16.mxu0 %v212
    %592 = vmatmul.mubr.bf16.gmra.mrb[0].mxu0 %v211
    %v593 = vpop.f32.mrb[0].mxu0
    %v594 = vadd.f32 %v252, %v593
    %v595 = vpop.f32.mrb[0].mxu0
    %v596 = vadd.f32 %v256, %v595
    %v597 = vpop.f32.mrb[0].mxu0
    %v598 = vadd.f32 %v252, %v597
    %v599 = vpop.f32.mrb[0].mxu0
    %v600 = vadd.f32 %v256, %v599
    %601 = vmatprep.mubr.bf16.mxu0 %v214
    %602 = vmatmul.mubr.bf16.gmra.mrb[0].mxu0 %v213
    %v603 = vpop.f32.mrb[0].mxu0
    %v604 = vadd.f32 %v252, %v603
    %v605 = vpop.f32.mrb[0].mxu0
    %v606 = vadd.f32 %v256, %v605
    %v607 = vpop.f32.mrb[0].mxu0
    %v608 = vadd.f32 %v252, %v607
    %v609 = vpop.f32.mrb[0].mxu0
    %v610 = vadd.f32 %v256, %v609
    %611 = vdwg.mxu0
    %v612 = vpack.c.bf16 %v458, %v454
    %v613 = vpack.c.bf16 %v460, %v456
    %v614 = vpack.c.bf16 %v468, %v464
    %v615 = vpack.c.bf16 %v470, %v466
    %v616 = vpack.c.bf16 %v478, %v474
    %v617 = vpack.c.bf16 %v480, %v476
    %v618 = vpack.c.bf16 %v488, %v484
    %v619 = vpack.c.bf16 %v490, %v486
    %v620 = vpack.c.bf16 %v498, %v494
    %v621 = vpack.c.bf16 %v500, %v496
    %v622 = vpack.c.bf16 %v508, %v504
    %v623 = vpack.c.bf16 %v510, %v506
    %v624 = vpack.c.bf16 %v518, %v514
    %v625 = vpack.c.bf16 %v520, %v516
    %v626 = vpack.c.bf16 %v528, %v524
    %v627 = vpack.c.bf16 %v530, %v526
    %v628 = vpack.c.bf16 %v538, %v534
    %v629 = vpack.c.bf16 %v540, %v536
    %v630 = vpack.c.bf16 %v548, %v544
    %v631 = vpack.c.bf16 %v550, %v546
    %v632 = vpack.c.bf16 %v558, %v554
    %v633 = vpack.c.bf16 %v560, %v556
    %v634 = vpack.c.bf16 %v568, %v564
    %v635 = vpack.c.bf16 %v570, %v566
    %v636 = vpack.c.bf16 %v578, %v574
    %v637 = vpack.c.bf16 %v580, %v576
    %v638 = vpack.c.bf16 %v588, %v584
    %v639 = vpack.c.bf16 %v590, %v586
    %v640 = vpack.c.bf16 %v598, %v594
    %v641 = vpack.c.bf16 %v600, %v596
    %v642 = vpack.c.bf16 %v608, %v604
    %v643 = vpack.c.bf16 %v610, %v606
    %v676 = vunpack.c.l.b16 %v612
    %v677 = vunpack.c.l.b16 %v613
    %v678 = vunpack.c.h.b16 %v612
    %v679 = vunpack.c.h.b16 %v613
    %v680 = vunpack.c.l.b16 %v614
    %v681 = vunpack.c.l.b16 %v615
    %v682 = vunpack.c.h.b16 %v614
    %v683 = vunpack.c.h.b16 %v615
    %v684 = vunpack.c.l.b16 %v616
    %v685 = vunpack.c.l.b16 %v617
    %v686 = vunpack.c.h.b16 %v616
    %v687 = vunpack.c.h.b16 %v617
    %v688 = vunpack.c.l.b16 %v618
    %v689 = vunpack.c.l.b16 %v619
    %v690 = vunpack.c.h.b16 %v618
    %v691 = vunpack.c.h.b16 %v619
    %v692 = vunpack.c.l.b16 %v620
    %v693 = vunpack.c.l.b16 %v621
    %v694 = vunpack.c.h.b16 %v620
    %v695 = vunpack.c.h.b16 %v621
    %v696 = vunpack.c.l.b16 %v622
    %v697 = vunpack.c.l.b16 %v623
    %v698 = vunpack.c.h.b16 %v622
    %v699 = vunpack.c.h.b16 %v623
    %v700 = vunpack.c.l.b16 %v624
    %v701 = vunpack.c.l.b16 %v625
    %v702 = vunpack.c.h.b16 %v624
    %v703 = vunpack.c.h.b16 %v625
    %v704 = vunpack.c.l.b16 %v626
    %v705 = vunpack.c.l.b16 %v627
    %v706 = vunpack.c.h.b16 %v626
    %v707 = vunpack.c.h.b16 %v627
    %v708 = vunpack.c.l.b16 %v628
    %v709 = vunpack.c.l.b16 %v629
    %v710 = vunpack.c.h.b16 %v628
    %v711 = vunpack.c.h.b16 %v629
    %v712 = vunpack.c.l.b16 %v630
    %v713 = vunpack.c.l.b16 %v631
    %v714 = vunpack.c.h.b16 %v630
    %v715 = vunpack.c.h.b16 %v631
    %v716 = vunpack.c.l.b16 %v632
    %v717 = vunpack.c.l.b16 %v633
    %v718 = vunpack.c.h.b16 %v632
    %v719 = vunpack.c.h.b16 %v633
    %v720 = vunpack.c.l.b16 %v634
    %v721 = vunpack.c.l.b16 %v635
    %v722 = vunpack.c.h.b16 %v634
    %v723 = vunpack.c.h.b16 %v635
    %v724 = vunpack.c.l.b16 %v636
    %v725 = vunpack.c.l.b16 %v637
    %v726 = vunpack.c.h.b16 %v636
    %v727 = vunpack.c.h.b16 %v637
    %v728 = vunpack.c.l.b16 %v638
    %v729 = vunpack.c.l.b16 %v639
    %v730 = vunpack.c.h.b16 %v638
    %v731 = vunpack.c.h.b16 %v639
    %v732 = vunpack.c.l.b16 %v640
    %v733 = vunpack.c.l.b16 %v641
    %v734 = vunpack.c.h.b16 %v640
    %v735 = vunpack.c.h.b16 %v641
    %v736 = vunpack.c.l.b16 %v642
    %v737 = vunpack.c.l.b16 %v643
    %v738 = vunpack.c.h.b16 %v642
    %v739 = vunpack.c.h.b16 %v643
    %v740 = vpack.c.b16 %v677, %v676
    %v741 = vpack.c.b16 %v679, %v678
    %v742 = vpack.c.b16 %v681, %v680
    %v743 = vpack.c.b16 %v683, %v682
    %v744 = vpack.c.b16 %v685, %v684
    %v745 = vpack.c.b16 %v687, %v686
    %v746 = vpack.c.b16 %v689, %v688
    %v747 = vpack.c.b16 %v691, %v690
    %v748 = vpack.c.b16 %v693, %v692
    %v749 = vpack.c.b16 %v695, %v694
    %v750 = vpack.c.b16 %v697, %v696
    %v751 = vpack.c.b16 %v699, %v698
    %v752 = vpack.c.b16 %v701, %v700
    %v753 = vpack.c.b16 %v703, %v702
    %v754 = vpack.c.b16 %v705, %v704
    %v755 = vpack.c.b16 %v707, %v706
    %v756 = vpack.c.b16 %v709, %v708
    %v757 = vpack.c.b16 %v711, %v710
    %v758 = vpack.c.b16 %v713, %v712
    %v759 = vpack.c.b16 %v715, %v714
    %v760 = vpack.c.b16 %v717, %v716
    %v761 = vpack.c.b16 %v719, %v718
    %v762 = vpack.c.b16 %v721, %v720
    %v763 = vpack.c.b16 %v723, %v722
    %v764 = vpack.c.b16 %v725, %v724
    %v765 = vpack.c.b16 %v727, %v726
    %v766 = vpack.c.b16 %v729, %v728
    %v767 = vpack.c.b16 %v731, %v730
    %v768 = vpack.c.b16 %v733, %v732
    %v769 = vpack.c.b16 %v735, %v734
    %v770 = vpack.c.b16 %v737, %v736
    %v771 = vpack.c.b16 %v739, %v738
    %804 = vst [vmem:[#allocation13] sm:$0xff] %v740
    %805 = vst [vmem:[#allocation13 + $0x8] sm:$0xff] %v741
    %806 = vst [vmem:[#allocation13 + $0x10] sm:$0xff] %v742
    %807 = vst [vmem:[#allocation13 + $0x18] sm:$0xff] %v743
    %808 = vst [vmem:[#allocation13 + $0x20] sm:$0xff] %v744
    %809 = vst [vmem:[#allocation13 + $0x28] sm:$0xff] %v745
    %810 = vst [vmem:[#allocation13 + $0x30] sm:$0xff] %v746
    %811 = vst [vmem:[#allocation13 + $0x38] sm:$0xff] %v747
    %812 = vst [vmem:[#allocation13 + $0x40] sm:$0xff] %v748
    %813 = vst [vmem:[#allocation13 + $0x48] sm:$0xff] %v749
    %814 = vst [vmem:[#allocation13 + $0x50] sm:$0xff] %v750
    %815 = vst [vmem:[#allocation13 + $0x58] sm:$0xff] %v751
    %816 = vst [vmem:[#allocation13 + $0x60] sm:$0xff] %v752
    %817 = vst [vmem:[#allocation13 + $0x68] sm:$0xff] %v753
    %818 = vst [vmem:[#allocation13 + $0x70] sm:$0xff] %v754
    %819 = vst [vmem:[#allocation13 + $0x78] sm:$0xff] %v755
    %820 = vst [vmem:[#allocation13 + $0x80] sm:$0xff] %v756
    %821 = vst [vmem:[#allocation13 + $0x88] sm:$0xff] %v757
    %822 = vst [vmem:[#allocation13 + $0x90] sm:$0xff] %v758
    %823 = vst [vmem:[#allocation13 + $0x98] sm:$0xff] %v759
    %824 = vst [vmem:[#allocation13 + $0xa0] sm:$0xff] %v760
    %825 = vst [vmem:[#allocation13 + $0xa8] sm:$0xff] %v761
    %826 = vst [vmem:[#allocation13 + $0xb0] sm:$0xff] %v762
    %827 = vst [vmem:[#allocation13 + $0xb8] sm:$0xff] %v763
    %828 = vst [vmem:[#allocation13 + $0xc0] sm:$0xff] %v764
    %829 = vst [vmem:[#allocation13 + $0xc8] sm:$0xff] %v765
    %830 = vst [vmem:[#allocation13 + $0xd0] sm:$0xff] %v766
    %831 = vst [vmem:[#allocation13 + $0xd8] sm:$0xff] %v767
    %832 = vst [vmem:[#allocation13 + $0xe0] sm:$0xff] %v768
    %833 = vst [vmem:[#allocation13 + $0xe8] sm:$0xff] %v769
    %834 = vst [vmem:[#allocation13 + $0xf0] sm:$0xff] %v770
    %835 = vst [vmem:[#allocation13 + $0xf8] sm:$0xff] %v771
    %v836 = vld [vmem:[#allocation5] sm:$0xff]
    %v837 = vld [vmem:[#allocation5 + $0x8] sm:$0xff]
    %v838 = vld [vmem:[#allocation5 + $0x10] sm:$0xff]
    %v839 = vld [vmem:[#allocation5 + $0x18] sm:$0xff]
    %v840 = vld [vmem:[#allocation5 + $0x20] sm:$0xff]
    %v841 = vld [vmem:[#allocation5 + $0x28] sm:$0xff]
    %v842 = vld [vmem:[#allocation5 + $0x30] sm:$0xff]
    %v843 = vld [vmem:[#allocation5 + $0x38] sm:$0xff]
    %v844 = vld [vmem:[#allocation5 + $0x40] sm:$0xff]
    %v845 = vld [vmem:[#allocation5 + $0x48] sm:$0xff]
    %v846 = vld [vmem:[#allocation5 + $0x50] sm:$0xff]
    %v847 = vld [vmem:[#allocation5 + $0x58] sm:$0xff]
    %v848 = vld [vmem:[#allocation5 + $0x60] sm:$0xff]
    %v849 = vld [vmem:[#allocation5 + $0x68] sm:$0xff]
    %v850 = vld [vmem:[#allocation5 + $0x70] sm:$0xff]
    %v851 = vld [vmem:[#allocation5 + $0x78] sm:$0xff]
    %v852 = vld [vmem:[#allocation5 + $0x80] sm:$0xff]
    %v853 = vld [vmem:[#allocation5 + $0x88] sm:$0xff]
    %v854 = vld [vmem:[#allocation5 + $0x90] sm:$0xff]
    %v855 = vld [vmem:[#allocation5 + $0x98] sm:$0xff]
    %v856 = vld [vmem:[#allocation5 + $0xa0] sm:$0xff]
    %v857 = vld [vmem:[#allocation5 + $0xa8] sm:$0xff]
    %v858 = vld [vmem:[#allocation5 + $0xb0] sm:$0xff]
    %v859 = vld [vmem:[#allocation5 + $0xb8] sm:$0xff]
    %v860 = vld [vmem:[#allocation5 + $0xc0] sm:$0xff]
    %v861 = vld [vmem:[#allocation5 + $0xc8] sm:$0xff]
    %v862 = vld [vmem:[#allocation5 + $0xd0] sm:$0xff]
    %v863 = vld [vmem:[#allocation5 + $0xd8] sm:$0xff]
    %v864 = vld [vmem:[#allocation5 + $0xe0] sm:$0xff]
    %v865 = vld [vmem:[#allocation5 + $0xe8] sm:$0xff]
    %v866 = vld [vmem:[#allocation5 + $0xf0] sm:$0xff]
    %v867 = vld [vmem:[#allocation5 + $0xf8] sm:$0xff]
    %v868 = vld [vmem:[#allocation5 + $0x100] sm:$0xff]
    %v869 = vld [vmem:[#allocation5 + $0x108] sm:$0xff]
    %v870 = vld [vmem:[#allocation5 + $0x110] sm:$0xff]
    %v871 = vld [vmem:[#allocation5 + $0x118] sm:$0xff]
    %v872 = vld [vmem:[#allocation5 + $0x120] sm:$0xff]
    %v873 = vld [vmem:[#allocation5 + $0x128] sm:$0xff]
    %v874 = vld [vmem:[#allocation5 + $0x130] sm:$0xff]
    %v875 = vld [vmem:[#allocation5 + $0x138] sm:$0xff]
    %v876 = vld [vmem:[#allocation5 + $0x140] sm:$0xff]
    %v877 = vld [vmem:[#allocation5 + $0x148] sm:$0xff]
    %v878 = vld [vmem:[#allocation5 + $0x150] sm:$0xff]
    %v879 = vld [vmem:[#allocation5 + $0x158] sm:$0xff]
    %v880 = vld [vmem:[#allocation5 + $0x160] sm:$0xff]
    %v881 = vld [vmem:[#allocation5 + $0x168] sm:$0xff]
    %v882 = vld [vmem:[#allocation5 + $0x170] sm:$0xff]
    %v883 = vld [vmem:[#allocation5 + $0x178] sm:$0xff]
    %v884 = vld [vmem:[#allocation5 + $0x180] sm:$0xff]
    %v885 = vld [vmem:[#allocation5 + $0x188] sm:$0xff]
    %v886 = vld [vmem:[#allocation5 + $0x190] sm:$0xff]
    %v887 = vld [vmem:[#allocation5 + $0x198] sm:$0xff]
    %v888 = vld [vmem:[#allocation5 + $0x1a0] sm:$0xff]
    %v889 = vld [vmem:[#allocation5 + $0x1a8] sm:$0xff]
    %v890 = vld [vmem:[#allocation5 + $0x1b0] sm:$0xff]
    %v891 = vld [vmem:[#allocation5 + $0x1b8] sm:$0xff]
    %v892 = vld [vmem:[#allocation5 + $0x1c0] sm:$0xff]
    %v893 = vld [vmem:[#allocation5 + $0x1c8] sm:$0xff]
    %v894 = vld [vmem:[#allocation5 + $0x1d0] sm:$0xff]
    %v895 = vld [vmem:[#allocation5 + $0x1d8] sm:$0xff]
    %v896 = vld [vmem:[#allocation5 + $0x1e0] sm:$0xff]
    %v897 = vld [vmem:[#allocation5 + $0x1e8] sm:$0xff]
    %v898 = vld [vmem:[#allocation5 + $0x1f0] sm:$0xff]
    %v899 = vld [vmem:[#allocation5 + $0x1f8] sm:$0xff]
    %v900 = vpack.c.bf16 %v838, %v836
    %v901 = vpack.c.bf16 %v839, %v837
    %v902 = vpack.c.bf16 %v842, %v840
    %v903 = vpack.c.bf16 %v843, %v841
    %v904 = vpack.c.bf16 %v846, %v844
    %v905 = vpack.c.bf16 %v847, %v845
    %v906 = vpack.c.bf16 %v850, %v848
    %v907 = vpack.c.bf16 %v851, %v849
    %v908 = vpack.c.bf16 %v854, %v852
    %v909 = vpack.c.bf16 %v855, %v853
    %v910 = vpack.c.bf16 %v858, %v856
    %v911 = vpack.c.bf16 %v859, %v857
    %v912 = vpack.c.bf16 %v862, %v860
    %v913 = vpack.c.bf16 %v863, %v861
    %v914 = vpack.c.bf16 %v866, %v864
    %v915 = vpack.c.bf16 %v867, %v865
    %v916 = vpack.c.bf16 %v870, %v868
    %v917 = vpack.c.bf16 %v871, %v869
    %v918 = vpack.c.bf16 %v874, %v872
    %v919 = vpack.c.bf16 %v875, %v873
    %v920 = vpack.c.bf16 %v878, %v876
    %v921 = vpack.c.bf16 %v879, %v877
    %v922 = vpack.c.bf16 %v882, %v880
    %v923 = vpack.c.bf16 %v883, %v881
    %v924 = vpack.c.bf16 %v886, %v884
    %v925 = vpack.c.bf16 %v887, %v885
    %v926 = vpack.c.bf16 %v890, %v888
    %v927 = vpack.c.bf16 %v891, %v889
    %v928 = vpack.c.bf16 %v894, %v892
    %v929 = vpack.c.bf16 %v895, %v893
    %v930 = vpack.c.bf16 %v898, %v896
    %v931 = vpack.c.bf16 %v899, %v897
    %v932 = vld [vmem:[#allocation10] sm:$0xff]
    %v933 = vld [vmem:[#allocation10 + $0x8] sm:$0xff]
    %v934 = vld [vmem:[#allocation10 + $0x10] sm:$0xff]
    %v935 = vld [vmem:[#allocation10 + $0x18] sm:$0xff]
    %v936 = vld [vmem:[#allocation10 + $0x20] sm:$0xff]
    %v937 = vld [vmem:[#allocation10 + $0x28] sm:$0xff]
    %v938 = vld [vmem:[#allocation10 + $0x30] sm:$0xff]
    %v939 = vld [vmem:[#allocation10 + $0x38] sm:$0xff]
    %v940 = vld [vmem:[#allocation10 + $0x40] sm:$0xff]
    %v941 = vld [vmem:[#allocation10 + $0x48] sm:$0xff]
    %v942 = vld [vmem:[#allocation10 + $0x50] sm:$0xff]
    %v943 = vld [vmem:[#allocation10 + $0x58] sm:$0xff]
    %v944 = vld [vmem:[#allocation10 + $0x60] sm:$0xff]
    %v945 = vld [vmem:[#allocation10 + $0x68] sm:$0xff]
    %v946 = vld [vmem:[#allocation10 + $0x70] sm:$0xff]
    %v947 = vld [vmem:[#allocation10 + $0x78] sm:$0xff]
    %v948 = vld [vmem:[#allocation10 + $0x80] sm:$0xff]
    %v949 = vld [vmem:[#allocation10 + $0x88] sm:$0xff]
    %v950 = vld [vmem:[#allocation10 + $0x90] sm:$0xff]
    %v951 = vld [vmem:[#allocation10 + $0x98] sm:$0xff]
    %v952 = vld [vmem:[#allocation10 + $0xa0] sm:$0xff]
    %v953 = vld [vmem:[#allocation10 + $0xa8] sm:$0xff]
    %v954 = vld [vmem:[#allocation10 + $0xb0] sm:$0xff]
    %v955 = vld [vmem:[#allocation10 + $0xb8] sm:$0xff]
    %v956 = vld [vmem:[#allocation10 + $0xc0] sm:$0xff]
    %v957 = vld [vmem:[#allocation10 + $0xc8] sm:$0xff]
    %v958 = vld [vmem:[#allocation10 + $0xd0] sm:$0xff]
    %v959 = vld [vmem:[#allocation10 + $0xd8] sm:$0xff]
    %v960 = vld [vmem:[#allocation10 + $0xe0] sm:$0xff]
    %v961 = vld [vmem:[#allocation10 + $0xe8] sm:$0xff]
    %v962 = vld [vmem:[#allocation10 + $0xf0] sm:$0xff]
    %v963 = vld [vmem:[#allocation10 + $0xf8] sm:$0xff]
    %v964 = vld [vmem:[%s7] sm:$0x3]
    %v966 = vlaneseq
    %v967 = vshrl.u32 %v966, 7
    %v968 = vsub.s32 0, %v967
    %v969 = vrot.slane %v964, %v968
    %v970 = vlaneseq
    %v971 = vshrl.u32 %v970, 7
    %v972 = vsub.s32 1, %v971
    %v973 = vrot.slane %v964, %v972
    %v1008 = vunpack.c.l.b16 %v932
    %v1009 = vunpack.c.h.b16 %v932
    %v1010 = vunpack.c.l.b16 %v933
    %v1011 = vunpack.c.h.b16 %v933
    %v1012 = vunpack.c.l.b16 %v934
    %v1013 = vunpack.c.h.b16 %v934
    %v1014 = vunpack.c.l.b16 %v935
    %v1015 = vunpack.c.h.b16 %v935
    %v1016 = vunpack.c.l.b16 %v936
    %v1017 = vunpack.c.h.b16 %v936
    %v1018 = vunpack.c.l.b16 %v937
    %v1019 = vunpack.c.h.b16 %v937
    %v1020 = vunpack.c.l.b16 %v938
    %v1021 = vunpack.c.h.b16 %v938
    %v1022 = vunpack.c.l.b16 %v939
    %v1023 = vunpack.c.h.b16 %v939
    %v1024 = vunpack.c.l.b16 %v940
    %v1025 = vunpack.c.h.b16 %v940
    %v1026 = vunpack.c.l.b16 %v941
    %v1027 = vunpack.c.h.b16 %v941
    %v1028 = vunpack.c.l.b16 %v942
    %v1029 = vunpack.c.h.b16 %v942
    %v1030 = vunpack.c.l.b16 %v943
    %v1031 = vunpack.c.h.b16 %v943
    %v1032 = vunpack.c.l.b16 %v944
    %v1033 = vunpack.c.h.b16 %v944
    %v1034 = vunpack.c.l.b16 %v945
    %v1035 = vunpack.c.h.b16 %v945
    %v1036 = vunpack.c.l.b16 %v946
    %v1037 = vunpack.c.h.b16 %v946
    %v1038 = vunpack.c.l.b16 %v947
    %v1039 = vunpack.c.h.b16 %v947
    %v1040 = vunpack.c.l.b16 %v948
    %v1041 = vunpack.c.h.b16 %v948
    %v1042 = vunpack.c.l.b16 %v949
    %v1043 = vunpack.c.h.b16 %v949
    %v1044 = vunpack.c.l.b16 %v950
    %v1045 = vunpack.c.h.b16 %v950
    %v1046 = vunpack.c.l.b16 %v951
    %v1047 = vunpack.c.h.b16 %v951
    %v1048 = vunpack.c.l.b16 %v952
    %v1049 = vunpack.c.h.b16 %v952
    %v1050 = vunpack.c.l.b16 %v953
    %v1051 = vunpack.c.h.b16 %v953
    %v1052 = vunpack.c.l.b16 %v954
    %v1053 = vunpack.c.h.b16 %v954
    %v1054 = vunpack.c.l.b16 %v955
    %v1055 = vunpack.c.h.b16 %v955
    %v1056 = vunpack.c.l.b16 %v956
    %v1057 = vunpack.c.h.b16 %v956
    %v1058 = vunpack.c.l.b16 %v957
    %v1059 = vunpack.c.h.b16 %v957
    %v1060 = vunpack.c.l.b16 %v958
    %v1061 = vunpack.c.h.b16 %v958
    %v1062 = vunpack.c.l.b16 %v959
    %v1063 = vunpack.c.h.b16 %v959
    %v1064 = vunpack.c.l.b16 %v960
    %v1065 = vunpack.c.h.b16 %v960
    %v1066 = vunpack.c.l.b16 %v961
    %v1067 = vunpack.c.h.b16 %v961
    %v1068 = vunpack.c.l.b16 %v962
    %v1069 = vunpack.c.h.b16 %v962
    %v1070 = vunpack.c.l.b16 %v963
    %v1071 = vunpack.c.h.b16 %v963
    %v1072 = vpack.c.b16 %v1010, %v1008
    %v1073 = vpack.c.b16 %v1011, %v1009
    %v1074 = vpack.c.b16 %v1014, %v1012
    %v1075 = vpack.c.b16 %v1015, %v1013
    %v1076 = vpack.c.b16 %v1018, %v1016
    %v1077 = vpack.c.b16 %v1019, %v1017
    %v1078 = vpack.c.b16 %v1022, %v1020
    %v1079 = vpack.c.b16 %v1023, %v1021
    %v1080 = vpack.c.b16 %v1026, %v1024
    %v1081 = vpack.c.b16 %v1027, %v1025
    %v1082 = vpack.c.b16 %v1030, %v1028
    %v1083 = vpack.c.b16 %v1031, %v1029
    %v1084 = vpack.c.b16 %v1034, %v1032
    %v1085 = vpack.c.b16 %v1035, %v1033
    %v1086 = vpack.c.b16 %v1038, %v1036
    %v1087 = vpack.c.b16 %v1039, %v1037
    %v1088 = vpack.c.b16 %v1042, %v1040
    %v1089 = vpack.c.b16 %v1043, %v1041
    %v1090 = vpack.c.b16 %v1046, %v1044
    %v1091 = vpack.c.b16 %v1047, %v1045
    %v1092 = vpack.c.b16 %v1050, %v1048
    %v1093 = vpack.c.b16 %v1051, %v1049
    %v1094 = vpack.c.b16 %v1054, %v1052
    %v1095 = vpack.c.b16 %v1055, %v1053
    %v1096 = vpack.c.b16 %v1058, %v1056
    %v1097 = vpack.c.b16 %v1059, %v1057
    %v1098 = vpack.c.b16 %v1062, %v1060
    %v1099 = vpack.c.b16 %v1063, %v1061
    %v1100 = vpack.c.b16 %v1066, %v1064
    %v1101 = vpack.c.b16 %v1067, %v1065
    %v1102 = vpack.c.b16 %v1070, %v1068
    %v1103 = vpack.c.b16 %v1071, %v1069
    %1136 = vmatprep.subr.bf16.mxu0 %v1073
    %1137 = vmatpush1.bf16.msra.mxu0 %v1072
    %1138 = vmatprep.subr.bf16.mxu0 %v1075
    %1139 = vmatpush1.bf16.msra.mxu0 %v1074
    %1140 = vmatprep.subr.bf16.mxu0 %v1077
    %1141 = vmatpush1.bf16.msra.mxu0 %v1076
    %1142 = vmatprep.subr.bf16.mxu0 %v1079
    %1143 = vmatpush1.bf16.msra.mxu0 %v1078
    %1144 = vmatprep.subr.bf16.mxu0 %v1081
    %1145 = vmatpush1.bf16.msra.mxu0 %v1080
    %1146 = vmatprep.subr.bf16.mxu0 %v1083
    %1147 = vmatpush1.bf16.msra.mxu0 %v1082
    %1148 = vmatprep.subr.bf16.mxu0 %v1085
    %1149 = vmatpush1.bf16.msra.mxu0 %v1084
    %1150 = vmatprep.subr.bf16.mxu0 %v1087
    %1151 = vmatpush1.bf16.msra.mxu0 %v1086
    %1152 = vmatprep.subr.bf16.mxu0 %v1089
    %1153 = vmatpush1.bf16.msra.mxu0 %v1088
    %1154 = vmatprep.subr.bf16.mxu0 %v1091
    %1155 = vmatpush1.bf16.msra.mxu0 %v1090
    %1156 = vmatprep.subr.bf16.mxu0 %v1093
    %1157 = vmatpush1.bf16.msra.mxu0 %v1092
    %1158 = vmatprep.subr.bf16.mxu0 %v1095
    %1159 = vmatpush1.bf16.msra.mxu0 %v1094
    %1160 = vmatprep.subr.bf16.mxu0 %v1097
    %1161 = vmatpush1.bf16.msra.mxu0 %v1096
    %1162 = vmatprep.subr.bf16.mxu0 %v1099
    %1163 = vmatpush1.bf16.msra.mxu0 %v1098
    %1164 = vmatprep.subr.bf16.mxu0 %v1101
    %1165 = vmatpush1.bf16.msra.mxu0 %v1100
    %1166 = vmatprep.subr.bf16.mxu0 %v1103
    %1167 = vmatpush1.bf16.msra.mxu0 %v1102
    %1168 = vmatprep.mubr.bf16.mxu0 %v901
    %1169 = vmatmul.mubr.bf16.gmra.mrb[0].mxu0 %v900
    %v1170 = vpop.f32.mrb[0].mxu0
    %v1171 = vadd.f32 %v969, %v1170
    %v1172 = vpop.f32.mrb[0].mxu0
    %v1173 = vadd.f32 %v973, %v1172
    %v1174 = vpop.f32.mrb[0].mxu0
    %v1175 = vadd.f32 %v969, %v1174
    %v1176 = vpop.f32.mrb[0].mxu0
    %v1177 = vadd.f32 %v973, %v1176
    %1178 = vmatprep.mubr.bf16.mxu0 %v903
    %1179 = vmatmul.mubr.bf16.gmra.mrb[0].mxu0 %v902
    %v1180 = vpop.f32.mrb[0].mxu0
    %v1181 = vadd.f32 %v969, %v1180
    %v1182 = vpop.f32.mrb[0].mxu0
    %v1183 = vadd.f32 %v973, %v1182
    %v1184 = vpop.f32.mrb[0].mxu0
    %v1185 = vadd.f32 %v969, %v1184
    %v1186 = vpop.f32.mrb[0].mxu0
    %v1187 = vadd.f32 %v973, %v1186
    %1188 = vmatprep.mubr.bf16.mxu0 %v905
    %1189 = vmatmul.mubr.bf16.gmra.mrb[0].mxu0 %v904
    %v1190 = vpop.f32.mrb[0].mxu0
    %v1191 = vadd.f32 %v969, %v1190
    %v1192 = vpop.f32.mrb[0].mxu0
    %v1193 = vadd.f32 %v973, %v1192
    %v1194 = vpop.f32.mrb[0].mxu0
    %v1195 = vadd.f32 %v969, %v1194
    %v1196 = vpop.f32.mrb[0].mxu0
    %v1197 = vadd.f32 %v973, %v1196
    %1198 = vmatprep.mubr.bf16.mxu0 %v907
    %1199 = vmatmul.mubr.bf16.gmra.mrb[0].mxu0 %v906
    %v1200 = vpop.f32.mrb[0].mxu0
    %v1201 = vadd.f32 %v969, %v1200
    %v1202 = vpop.f32.mrb[0].mxu0
    %v1203 = vadd.f32 %v973, %v1202
    %v1204 = vpop.f32.mrb[0].mxu0
    %v1205 = vadd.f32 %v969, %v1204
    %v1206 = vpop.f32.mrb[0].mxu0
    %v1207 = vadd.f32 %v973, %v1206
    %1208 = vmatprep.mubr.bf16.mxu0 %v909
    %1209 = vmatmul.mubr.bf16.gmra.mrb[0].mxu0 %v908
    %v1210 = vpop.f32.mrb[0].mxu0
    %v1211 = vadd.f32 %v969, %v1210
    %v1212 = vpop.f32.mrb[0].mxu0
    %v1213 = vadd.f32 %v973, %v1212
    %v1214 = vpop.f32.mrb[0].mxu0
    %v1215 = vadd.f32 %v969, %v1214
    %v1216 = vpop.f32.mrb[0].mxu0
    %v1217 = vadd.f32 %v973, %v1216
    %1218 = vmatprep.mubr.bf16.mxu0 %v911
    %1219 = vmatmul.mubr.bf16.gmra.mrb[0].mxu0 %v910
    %v1220 = vpop.f32.mrb[0].mxu0
    %v1221 = vadd.f32 %v969, %v1220
    %v1222 = vpop.f32.mrb[0].mxu0
    %v1223 = vadd.f32 %v973, %v1222
    %v1224 = vpop.f32.mrb[0].mxu0
    %v1225 = vadd.f32 %v969, %v1224
    %v1226 = vpop.f32.mrb[0].mxu0
    %v1227 = vadd.f32 %v973, %v1226
    %1228 = vmatprep.mubr.bf16.mxu0 %v913
    %1229 = vmatmul.mubr.bf16.gmra.mrb[0].mxu0 %v912
    %v1230 = vpop.f32.mrb[0].mxu0
    %v1231 = vadd.f32 %v969, %v1230
    %v1232 = vpop.f32.mrb[0].mxu0
    %v1233 = vadd.f32 %v973, %v1232
    %v1234 = vpop.f32.mrb[0].mxu0
    %v1235 = vadd.f32 %v969, %v1234
    %v1236 = vpop.f32.mrb[0].mxu0
    %v1237 = vadd.f32 %v973, %v1236
    %1238 = vmatprep.mubr.bf16.mxu0 %v915
    %1239 = vmatmul.mubr.bf16.gmra.mrb[0].mxu0 %v914
    %v1240 = vpop.f32.mrb[0].mxu0
    %v1241 = vadd.f32 %v969, %v1240
    %v1242 = vpop.f32.mrb[0].mxu0
    %v1243 = vadd.f32 %v973, %v1242
    %v1244 = vpop.f32.mrb[0].mxu0
    %v1245 = vadd.f32 %v969, %v1244
    %v1246 = vpop.f32.mrb[0].mxu0
    %v1247 = vadd.f32 %v973, %v1246
    %1248 = vmatprep.mubr.bf16.mxu0 %v917
    %1249 = vmatmul.mubr.bf16.gmra.mrb[0].mxu0 %v916
    %v1250 = vpop.f32.mrb[0].mxu0
    %v1251 = vadd.f32 %v969, %v1250
    %v1252 = vpop.f32.mrb[0].mxu0
    %v1253 = vadd.f32 %v973, %v1252
    %v1254 = vpop.f32.mrb[0].mxu0
    %v1255 = vadd.f32 %v969, %v1254
    %v1256 = vpop.f32.mrb[0].mxu0
    %v1257 = vadd.f32 %v973, %v1256
    %1258 = vmatprep.mubr.bf16.mxu0 %v919
    %1259 = vmatmul.mubr.bf16.gmra.mrb[0].mxu0 %v918
    %v1260 = vpop.f32.mrb[0].mxu0
    %v1261 = vadd.f32 %v969, %v1260
    %v1262 = vpop.f32.mrb[0].mxu0
    %v1263 = vadd.f32 %v973, %v1262
    %v1264 = vpop.f32.mrb[0].mxu0
    %v1265 = vadd.f32 %v969, %v1264
    %v1266 = vpop.f32.mrb[0].mxu0
    %v1267 = vadd.f32 %v973, %v1266
    %1268 = vmatprep.mubr.bf16.mxu0 %v921
    %1269 = vmatmul.mubr.bf16.gmra.mrb[0].mxu0 %v920
    %v1270 = vpop.f32.mrb[0].mxu0
    %v1271 = vadd.f32 %v969, %v1270
    %v1272 = vpop.f32.mrb[0].mxu0
    %v1273 = vadd.f32 %v973, %v1272
    %v1274 = vpop.f32.mrb[0].mxu0
    %v1275 = vadd.f32 %v969, %v1274
    %v1276 = vpop.f32.mrb[0].mxu0
    %v1277 = vadd.f32 %v973, %v1276
    %1278 = vmatprep.mubr.bf16.mxu0 %v923
    %1279 = vmatmul.mubr.bf16.gmra.mrb[0].mxu0 %v922
    %v1280 = vpop.f32.mrb[0].mxu0
    %v1281 = vadd.f32 %v969, %v1280
    %v1282 = vpop.f32.mrb[0].mxu0
    %v1283 = vadd.f32 %v973, %v1282
    %v1284 = vpop.f32.mrb[0].mxu0
    %v1285 = vadd.f32 %v969, %v1284
    %v1286 = vpop.f32.mrb[0].mxu0
    %v1287 = vadd.f32 %v973, %v1286
    %1288 = vmatprep.mubr.bf16.mxu0 %v925
    %1289 = vmatmul.mubr.bf16.gmra.mrb[0].mxu0 %v924
    %v1290 = vpop.f32.mrb[0].mxu0
    %v1291 = vadd.f32 %v969, %v1290
    %v1292 = vpop.f32.mrb[0].mxu0
    %v1293 = vadd.f32 %v973, %v1292
    %v1294 = vpop.f32.mrb[0].mxu0
    %v1295 = vadd.f32 %v969, %v1294
    %v1296 = vpop.f32.mrb[0].mxu0
    %v1297 = vadd.f32 %v973, %v1296
    %1298 = vmatprep.mubr.bf16.mxu0 %v927
    %1299 = vmatmul.mubr.bf16.gmra.mrb[0].mxu0 %v926
    %v1300 = vpop.f32.mrb[0].mxu0
    %v1301 = vadd.f32 %v969, %v1300
    %v1302 = vpop.f32.mrb[0].mxu0
    %v1303 = vadd.f32 %v973, %v1302
    %v1304 = vpop.f32.mrb[0].mxu0
    %v1305 = vadd.f32 %v969, %v1304
    %v1306 = vpop.f32.mrb[0].mxu0
    %v1307 = vadd.f32 %v973, %v1306
    %1308 = vmatprep.mubr.bf16.mxu0 %v929
    %1309 = vmatmul.mubr.bf16.gmra.mrb[0].mxu0 %v928
    %v1310 = vpop.f32.mrb[0].mxu0
    %v1311 = vadd.f32 %v969, %v1310
    %v1312 = vpop.f32.mrb[0].mxu0
    %v1313 = vadd.f32 %v973, %v1312
    %v1314 = vpop.f32.mrb[0].mxu0
    %v1315 = vadd.f32 %v969, %v1314
    %v1316 = vpop.f32.mrb[0].mxu0
    %v1317 = vadd.f32 %v973, %v1316
    %1318 = vmatprep.mubr.bf16.mxu0 %v931
    %1319 = vmatmul.mubr.bf16.gmra.mrb[0].mxu0 %v930
    %v1320 = vpop.f32.mrb[0].mxu0
    %v1321 = vadd.f32 %v969, %v1320
    %v1322 = vpop.f32.mrb[0].mxu0
    %v1323 = vadd.f32 %v973, %v1322
    %v1324 = vpop.f32.mrb[0].mxu0
    %v1325 = vadd.f32 %v969, %v1324
    %v1326 = vpop.f32.mrb[0].mxu0
    %v1327 = vadd.f32 %v973, %v1326
    %1328 = vdwg.mxu0
    %v1329 = vpack.c.bf16 %v1175, %v1171
    %v1330 = vpack.c.bf16 %v1177, %v1173
    %v1331 = vpack.c.bf16 %v1185, %v1181
    %v1332 = vpack.c.bf16 %v1187, %v1183
    %v1333 = vpack.c.bf16 %v1195, %v1191
    %v1334 = vpack.c.bf16 %v1197, %v1193
    %v1335 = vpack.c.bf16 %v1205, %v1201
    %v1336 = vpack.c.bf16 %v1207, %v1203
    %v1337 = vpack.c.bf16 %v1215, %v1211
    %v1338 = vpack.c.bf16 %v1217, %v1213
    %v1339 = vpack.c.bf16 %v1225, %v1221
    %v1340 = vpack.c.bf16 %v1227, %v1223
    %v1341 = vpack.c.bf16 %v1235, %v1231
    %v1342 = vpack.c.bf16 %v1237, %v1233
    %v1343 = vpack.c.bf16 %v1245, %v1241
    %v1344 = vpack.c.bf16 %v1247, %v1243
    %v1345 = vpack.c.bf16 %v1255, %v1251
    %v1346 = vpack.c.bf16 %v1257, %v1253
    %v1347 = vpack.c.bf16 %v1265, %v1261
    %v1348 = vpack.c.bf16 %v1267, %v1263
    %v1349 = vpack.c.bf16 %v1275, %v1271
    %v1350 = vpack.c.bf16 %v1277, %v1273
    %v1351 = vpack.c.bf16 %v1285, %v1281
    %v1352 = vpack.c.bf16 %v1287, %v1283
    %v1353 = vpack.c.bf16 %v1295, %v1291
    %v1354 = vpack.c.bf16 %v1297, %v1293
    %v1355 = vpack.c.bf16 %v1305, %v1301
    %v1356 = vpack.c.bf16 %v1307, %v1303
    %v1357 = vpack.c.bf16 %v1315, %v1311
    %v1358 = vpack.c.bf16 %v1317, %v1313
    %v1359 = vpack.c.bf16 %v1325, %v1321
    %v1360 = vpack.c.bf16 %v1327, %v1323
    %v1393 = vunpack.c.l.b16 %v1329
    %v1394 = vunpack.c.l.b16 %v1330
    %v1395 = vunpack.c.h.b16 %v1329
    %v1396 = vunpack.c.h.b16 %v1330
    %v1397 = vunpack.c.l.b16 %v1331
    %v1398 = vunpack.c.l.b16 %v1332
    %v1399 = vunpack.c.h.b16 %v1331
    %v1400 = vunpack.c.h.b16 %v1332
    %v1401 = vunpack.c.l.b16 %v1333
    %v1402 = vunpack.c.l.b16 %v1334
    %v1403 = vunpack.c.h.b16 %v1333
    %v1404 = vunpack.c.h.b16 %v1334
    %v1405 = vunpack.c.l.b16 %v1335
    %v1406 = vunpack.c.l.b16 %v1336
    %v1407 = vunpack.c.h.b16 %v1335
    %v1408 = vunpack.c.h.b16 %v1336
    %v1409 = vunpack.c.l.b16 %v1337
    %v1410 = vunpack.c.l.b16 %v1338
    %v1411 = vunpack.c.h.b16 %v1337
    %v1412 = vunpack.c.h.b16 %v1338
    %v1413 = vunpack.c.l.b16 %v1339
    %v1414 = vunpack.c.l.b16 %v1340
    %v1415 = vunpack.c.h.b16 %v1339
    %v1416 = vunpack.c.h.b16 %v1340
    %v1417 = vunpack.c.l.b16 %v1341
    %v1418 = vunpack.c.l.b16 %v1342
    %v1419 = vunpack.c.h.b16 %v1341
    %v1420 = vunpack.c.h.b16 %v1342
    %v1421 = vunpack.c.l.b16 %v1343
    %v1422 = vunpack.c.l.b16 %v1344
    %v1423 = vunpack.c.h.b16 %v1343
    %v1424 = vunpack.c.h.b16 %v1344
    %v1425 = vunpack.c.l.b16 %v1345
    %v1426 = vunpack.c.l.b16 %v1346
    %v1427 = vunpack.c.h.b16 %v1345
    %v1428 = vunpack.c.h.b16 %v1346
    %v1429 = vunpack.c.l.b16 %v1347
    %v1430 = vunpack.c.l.b16 %v1348
    %v1431 = vunpack.c.h.b16 %v1347
    %v1432 = vunpack.c.h.b16 %v1348
    %v1433 = vunpack.c.l.b16 %v1349
    %v1434 = vunpack.c.l.b16 %v1350
    %v1435 = vunpack.c.h.b16 %v1349
    %v1436 = vunpack.c.h.b16 %v1350
    %v1437 = vunpack.c.l.b16 %v1351
    %v1438 = vunpack.c.l.b16 %v1352
    %v1439 = vunpack.c.h.b16 %v1351
    %v1440 = vunpack.c.h.b16 %v1352
    %v1441 = vunpack.c.l.b16 %v1353
    %v1442 = vunpack.c.l.b16 %v1354
    %v1443 = vunpack.c.h.b16 %v1353
    %v1444 = vunpack.c.h.b16 %v1354
    %v1445 = vunpack.c.l.b16 %v1355
    %v1446 = vunpack.c.l.b16 %v1356
    %v1447 = vunpack.c.h.b16 %v1355
    %v1448 = vunpack.c.h.b16 %v1356
    %v1449 = vunpack.c.l.b16 %v1357
    %v1450 = vunpack.c.l.b16 %v1358
    %v1451 = vunpack.c.h.b16 %v1357
    %v1452 = vunpack.c.h.b16 %v1358
    %v1453 = vunpack.c.l.b16 %v1359
    %v1454 = vunpack.c.l.b16 %v1360
    %v1455 = vunpack.c.h.b16 %v1359
    %v1456 = vunpack.c.h.b16 %v1360
    %v1457 = vpack.c.b16 %v1394, %v1393
    %v1458 = vpack.c.b16 %v1396, %v1395
    %v1459 = vpack.c.b16 %v1398, %v1397
    %v1460 = vpack.c.b16 %v1400, %v1399
    %v1461 = vpack.c.b16 %v1402, %v1401
    %v1462 = vpack.c.b16 %v1404, %v1403
    %v1463 = vpack.c.b16 %v1406, %v1405
    %v1464 = vpack.c.b16 %v1408, %v1407
    %v1465 = vpack.c.b16 %v1410, %v1409
    %v1466 = vpack.c.b16 %v1412, %v1411
    %v1467 = vpack.c.b16 %v1414, %v1413
    %v1468 = vpack.c.b16 %v1416, %v1415
    %v1469 = vpack.c.b16 %v1418, %v1417
    %v1470 = vpack.c.b16 %v1420, %v1419
    %v1471 = vpack.c.b16 %v1422, %v1421
    %v1472 = vpack.c.b16 %v1424, %v1423
    %v1473 = vpack.c.b16 %v1426, %v1425
    %v1474 = vpack.c.b16 %v1428, %v1427
    %v1475 = vpack.c.b16 %v1430, %v1429
    %v1476 = vpack.c.b16 %v1432, %v1431
    %v1477 = vpack.c.b16 %v1434, %v1433
    %v1478 = vpack.c.b16 %v1436, %v1435
    %v1479 = vpack.c.b16 %v1438, %v1437
    %v1480 = vpack.c.b16 %v1440, %v1439
    %v1481 = vpack.c.b16 %v1442, %v1441
    %v1482 = vpack.c.b16 %v1444, %v1443
    %v1483 = vpack.c.b16 %v1446, %v1445
    %v1484 = vpack.c.b16 %v1448, %v1447
    %v1485 = vpack.c.b16 %v1450, %v1449
    %v1486 = vpack.c.b16 %v1452, %v1451
    %v1487 = vpack.c.b16 %v1454, %v1453
    %v1488 = vpack.c.b16 %v1456, %v1455
    %1521 = vst [vmem:[#allocation14] sm:$0xff] %v1457
    %1522 = vst [vmem:[#allocation14 + $0x8] sm:$0xff] %v1458
    %1523 = vst [vmem:[#allocation14 + $0x10] sm:$0xff] %v1459
    %1524 = vst [vmem:[#allocation14 + $0x18] sm:$0xff] %v1460
    %1525 = vst [vmem:[#allocation14 + $0x20] sm:$0xff] %v1461
    %1526 = vst [vmem:[#allocation14 + $0x28] sm:$0xff] %v1462
    %1527 = vst [vmem:[#allocation14 + $0x30] sm:$0xff] %v1463
    %1528 = vst [vmem:[#allocation14 + $0x38] sm:$0xff] %v1464
    %1529 = vst [vmem:[#allocation14 + $0x40] sm:$0xff] %v1465
    %1530 = vst [vmem:[#allocation14 + $0x48] sm:$0xff] %v1466
    %1531 = vst [vmem:[#allocation14 + $0x50] sm:$0xff] %v1467
    %1532 = vst [vmem:[#allocation14 + $0x58] sm:$0xff] %v1468
    %1533 = vst [vmem:[#allocation14 + $0x60] sm:$0xff] %v1469
    %1534 = vst [vmem:[#allocation14 + $0x68] sm:$0xff] %v1470
    %1535 = vst [vmem:[#allocation14 + $0x70] sm:$0xff] %v1471
    %1536 = vst [vmem:[#allocation14 + $0x78] sm:$0xff] %v1472
    %1537 = vst [vmem:[#allocation14 + $0x80] sm:$0xff] %v1473
    %1538 = vst [vmem:[#allocation14 + $0x88] sm:$0xff] %v1474
    %1539 = vst [vmem:[#allocation14 + $0x90] sm:$0xff] %v1475
    %1540 = vst [vmem:[#allocation14 + $0x98] sm:$0xff] %v1476
    %1541 = vst [vmem:[#allocation14 + $0xa0] sm:$0xff] %v1477
    %1542 = vst [vmem:[#allocation14 + $0xa8] sm:$0xff] %v1478
    %1543 = vst [vmem:[#allocation14 + $0xb0] sm:$0xff] %v1479
    %1544 = vst [vmem:[#allocation14 + $0xb8] sm:$0xff] %v1480
    %1545 = vst [vmem:[#allocation14 + $0xc0] sm:$0xff] %v1481
    %1546 = vst [vmem:[#allocation14 + $0xc8] sm:$0xff] %v1482
    %1547 = vst [vmem:[#allocation14 + $0xd0] sm:$0xff] %v1483
    %1548 = vst [vmem:[#allocation14 + $0xd8] sm:$0xff] %v1484
    %1549 = vst [vmem:[#allocation14 + $0xe0] sm:$0xff] %v1485
    %1550 = vst [vmem:[#allocation14 + $0xe8] sm:$0xff] %v1486
    %1551 = vst [vmem:[#allocation14 + $0xf0] sm:$0xff] %v1487
    %1552 = vst [vmem:[#allocation14 + $0xf8] sm:$0xff] %v1488
    %v1553 = vld [vmem:[#allocation7] sm:$0xff]
    %v1554 = vld [vmem:[#allocation7 + $0x8] sm:$0xff]
    %v1555 = vld [vmem:[#allocation7 + $0x10] sm:$0xff]
    %v1556 = vld [vmem:[#allocation7 + $0x18] sm:$0xff]
    %v1557 = vld [vmem:[#allocation7 + $0x20] sm:$0xff]
    %v1558 = vld [vmem:[#allocation7 + $0x28] sm:$0xff]
    %v1559 = vld [vmem:[#allocation7 + $0x30] sm:$0xff]
    %v1560 = vld [vmem:[#allocation7 + $0x38] sm:$0xff]
    %v1561 = vld [vmem:[#allocation7 + $0x40] sm:$0xff]
    %v1562 = vld [vmem:[#allocation7 + $0x48] sm:$0xff]
    %v1563 = vld [vmem:[#allocation7 + $0x50] sm:$0xff]
    %v1564 = vld [vmem:[#allocation7 + $0x58] sm:$0xff]
    %v1565 = vld [vmem:[#allocation7 + $0x60] sm:$0xff]
    %v1566 = vld [vmem:[#allocation7 + $0x68] sm:$0xff]
    %v1567 = vld [vmem:[#allocation7 + $0x70] sm:$0xff]
    %v1568 = vld [vmem:[#allocation7 + $0x78] sm:$0xff]
    %v1569 = vld [vmem:[#allocation7 + $0x80] sm:$0xff]
    %v1570 = vld [vmem:[#allocation7 + $0x88] sm:$0xff]
    %v1571 = vld [vmem:[#allocation7 + $0x90] sm:$0xff]
    %v1572 = vld [vmem:[#allocation7 + $0x98] sm:$0xff]
    %v1573 = vld [vmem:[#allocation7 + $0xa0] sm:$0xff]
    %v1574 = vld [vmem:[#allocation7 + $0xa8] sm:$0xff]
    %v1575 = vld [vmem:[#allocation7 + $0xb0] sm:$0xff]
    %v1576 = vld [vmem:[#allocation7 + $0xb8] sm:$0xff]
    %v1577 = vld [vmem:[#allocation7 + $0xc0] sm:$0xff]
    %v1578 = vld [vmem:[#allocation7 + $0xc8] sm:$0xff]
    %v1579 = vld [vmem:[#allocation7 + $0xd0] sm:$0xff]
    %v1580 = vld [vmem:[#allocation7 + $0xd8] sm:$0xff]
    %v1581 = vld [vmem:[#allocation7 + $0xe0] sm:$0xff]
    %v1582 = vld [vmem:[#allocation7 + $0xe8] sm:$0xff]
    %v1583 = vld [vmem:[#allocation7 + $0xf0] sm:$0xff]
    %v1584 = vld [vmem:[#allocation7 + $0xf8] sm:$0xff]
    %v1585 = vld [vmem:[#allocation7 + $0x100] sm:$0xff]
    %v1586 = vld [vmem:[#allocation7 + $0x108] sm:$0xff]
    %v1587 = vld [vmem:[#allocation7 + $0x110] sm:$0xff]
    %v1588 = vld [vmem:[#allocation7 + $0x118] sm:$0xff]
    %v1589 = vld [vmem:[#allocation7 + $0x120] sm:$0xff]
    %v1590 = vld [vmem:[#allocation7 + $0x128] sm:$0xff]
    %v1591 = vld [vmem:[#allocation7 + $0x130] sm:$0xff]
    %v1592 = vld [vmem:[#allocation7 + $0x138] sm:$0xff]
    %v1593 = vld [vmem:[#allocation7 + $0x140] sm:$0xff]
    %v1594 = vld [vmem:[#allocation7 + $0x148] sm:$0xff]
    %v1595 = vld [vmem:[#allocation7 + $0x150] sm:$0xff]
    %v1596 = vld [vmem:[#allocation7 + $0x158] sm:$0xff]
    %v1597 = vld [vmem:[#allocation7 + $0x160] sm:$0xff]
    %v1598 = vld [vmem:[#allocation7 + $0x168] sm:$0xff]
    %v1599 = vld [vmem:[#allocation7 + $0x170] sm:$0xff]
    %v1600 = vld [vmem:[#allocation7 + $0x178] sm:$0xff]
    %v1601 = vld [vmem:[#allocation7 + $0x180] sm:$0xff]
    %v1602 = vld [vmem:[#allocation7 + $0x188] sm:$0xff]
    %v1603 = vld [vmem:[#allocation7 + $0x190] sm:$0xff]
    %v1604 = vld [vmem:[#allocation7 + $0x198] sm:$0xff]
    %v1605 = vld [vmem:[#allocation7 + $0x1a0] sm:$0xff]
    %v1606 = vld [vmem:[#allocation7 + $0x1a8] sm:$0xff]
    %v1607 = vld [vmem:[#allocation7 + $0x1b0] sm:$0xff]
    %v1608 = vld [vmem:[#allocation7 + $0x1b8] sm:$0xff]
    %v1609 = vld [vmem:[#allocation7 + $0x1c0] sm:$0xff]
    %v1610 = vld [vmem:[#allocation7 + $0x1c8] sm:$0xff]
    %v1611 = vld [vmem:[#allocation7 + $0x1d0] sm:$0xff]
    %v1612 = vld [vmem:[#allocation7 + $0x1d8] sm:$0xff]
    %v1613 = vld [vmem:[#allocation7 + $0x1e0] sm:$0xff]
    %v1614 = vld [vmem:[#allocation7 + $0x1e8] sm:$0xff]
    %v1615 = vld [vmem:[#allocation7 + $0x1f0] sm:$0xff]
    %v1616 = vld [vmem:[#allocation7 + $0x1f8] sm:$0xff]
    %v1617 = vpack.c.bf16 %v1555, %v1553
    %v1618 = vpack.c.bf16 %v1556, %v1554
    %v1619 = vpack.c.bf16 %v1559, %v1557
    %v1620 = vpack.c.bf16 %v1560, %v1558
    %v1621 = vpack.c.bf16 %v1563, %v1561
    %v1622 = vpack.c.bf16 %v1564, %v1562
    %v1623 = vpack.c.bf16 %v1567, %v1565
    %v1624 = vpack.c.bf16 %v1568, %v1566
    %v1625 = vpack.c.bf16 %v1571, %v1569
    %v1626 = vpack.c.bf16 %v1572, %v1570
    %v1627 = vpack.c.bf16 %v1575, %v1573
    %v1628 = vpack.c.bf16 %v1576, %v1574
    %v1629 = vpack.c.bf16 %v1579, %v1577
    %v1630 = vpack.c.bf16 %v1580, %v1578
    %v1631 = vpack.c.bf16 %v1583, %v1581
    %v1632 = vpack.c.bf16 %v1584, %v1582
    %v1633 = vpack.c.bf16 %v1587, %v1585
    %v1634 = vpack.c.bf16 %v1588, %v1586
    %v1635 = vpack.c.bf16 %v1591, %v1589
    %v1636 = vpack.c.bf16 %v1592, %v1590
    %v1637 = vpack.c.bf16 %v1595, %v1593
    %v1638 = vpack.c.bf16 %v1596, %v1594
    %v1639 = vpack.c.bf16 %v1599, %v1597
    %v1640 = vpack.c.bf16 %v1600, %v1598
    %v1641 = vpack.c.bf16 %v1603, %v1601
    %v1642 = vpack.c.bf16 %v1604, %v1602
    %v1643 = vpack.c.bf16 %v1607, %v1605
    %v1644 = vpack.c.bf16 %v1608, %v1606
    %v1645 = vpack.c.bf16 %v1611, %v1609
    %v1646 = vpack.c.bf16 %v1612, %v1610
    %v1647 = vpack.c.bf16 %v1615, %v1613
    %v1648 = vpack.c.bf16 %v1616, %v1614
    %v1649 = vld [vmem:[#allocation11] sm:$0xff]
    %v1650 = vld [vmem:[#allocation11 + $0x8] sm:$0xff]
    %v1651 = vld [vmem:[#allocation11 + $0x10] sm:$0xff]
    %v1652 = vld [vmem:[#allocation11 + $0x18] sm:$0xff]
    %v1653 = vld [vmem:[#allocation11 + $0x20] sm:$0xff]
    %v1654 = vld [vmem:[#allocation11 + $0x28] sm:$0xff]
    %v1655 = vld [vmem:[#allocation11 + $0x30] sm:$0xff]
    %v1656 = vld [vmem:[#allocation11 + $0x38] sm:$0xff]
    %v1657 = vld [vmem:[#allocation11 + $0x40] sm:$0xff]
    %v1658 = vld [vmem:[#allocation11 + $0x48] sm:$0xff]
    %v1659 = vld [vmem:[#allocation11 + $0x50] sm:$0xff]
    %v1660 = vld [vmem:[#allocation11 + $0x58] sm:$0xff]
    %v1661 = vld [vmem:[#allocation11 + $0x60] sm:$0xff]
    %v1662 = vld [vmem:[#allocation11 + $0x68] sm:$0xff]
    %v1663 = vld [vmem:[#allocation11 + $0x70] sm:$0xff]
    %v1664 = vld [vmem:[#allocation11 + $0x78] sm:$0xff]
    %v1665 = vld [vmem:[#allocation11 + $0x80] sm:$0xff]
    %v1666 = vld [vmem:[#allocation11 + $0x88] sm:$0xff]
    %v1667 = vld [vmem:[#allocation11 + $0x90] sm:$0xff]
    %v1668 = vld [vmem:[#allocation11 + $0x98] sm:$0xff]
    %v1669 = vld [vmem:[#allocation11 + $0xa0] sm:$0xff]
    %v1670 = vld [vmem:[#allocation11 + $0xa8] sm:$0xff]
    %v1671 = vld [vmem:[#allocation11 + $0xb0] sm:$0xff]
    %v1672 = vld [vmem:[#allocation11 + $0xb8] sm:$0xff]
    %v1673 = vld [vmem:[#allocation11 + $0xc0] sm:$0xff]
    %v1674 = vld [vmem:[#allocation11 + $0xc8] sm:$0xff]
    %v1675 = vld [vmem:[#allocation11 + $0xd0] sm:$0xff]
    %v1676 = vld [vmem:[#allocation11 + $0xd8] sm:$0xff]
    %v1677 = vld [vmem:[#allocation11 + $0xe0] sm:$0xff]
    %v1678 = vld [vmem:[#allocation11 + $0xe8] sm:$0xff]
    %v1679 = vld [vmem:[#allocation11 + $0xf0] sm:$0xff]
    %v1680 = vld [vmem:[#allocation11 + $0xf8] sm:$0xff]
    %v1681 = vld [vmem:[%s8] sm:$0x3]
    %v1683 = vlaneseq
    %v1684 = vshrl.u32 %v1683, 7
    %v1685 = vsub.s32 0, %v1684
    %v1686 = vrot.slane %v1681, %v1685
    %v1687 = vlaneseq
    %v1688 = vshrl.u32 %v1687, 7
    %v1689 = vsub.s32 1, %v1688
    %v1690 = vrot.slane %v1681, %v1689
    %v1725 = vunpack.c.l.b16 %v1649
    %v1726 = vunpack.c.h.b16 %v1649
    %v1727 = vunpack.c.l.b16 %v1650
    %v1728 = vunpack.c.h.b16 %v1650
    %v1729 = vunpack.c.l.b16 %v1651
    %v1730 = vunpack.c.h.b16 %v1651
    %v1731 = vunpack.c.l.b16 %v1652
    %v1732 = vunpack.c.h.b16 %v1652
    %v1733 = vunpack.c.l.b16 %v1653
    %v1734 = vunpack.c.h.b16 %v1653
    %v1735 = vunpack.c.l.b16 %v1654
    %v1736 = vunpack.c.h.b16 %v1654
    %v1737 = vunpack.c.l.b16 %v1655
    %v1738 = vunpack.c.h.b16 %v1655
    %v1739 = vunpack.c.l.b16 %v1656
    %v1740 = vunpack.c.h.b16 %v1656
    %v1741 = vunpack.c.l.b16 %v1657
    %v1742 = vunpack.c.h.b16 %v1657
    %v1743 = vunpack.c.l.b16 %v1658
    %v1744 = vunpack.c.h.b16 %v1658
    %v1745 = vunpack.c.l.b16 %v1659
    %v1746 = vunpack.c.h.b16 %v1659
    %v1747 = vunpack.c.l.b16 %v1660
    %v1748 = vunpack.c.h.b16 %v1660
    %v1749 = vunpack.c.l.b16 %v1661
    %v1750 = vunpack.c.h.b16 %v1661
    %v1751 = vunpack.c.l.b16 %v1662
    %v1752 = vunpack.c.h.b16 %v1662
    %v1753 = vunpack.c.l.b16 %v1663
    %v1754 = vunpack.c.h.b16 %v1663
    %v1755 = vunpack.c.l.b16 %v1664
    %v1756 = vunpack.c.h.b16 %v1664
    %v1757 = vunpack.c.l.b16 %v1665
    %v1758 = vunpack.c.h.b16 %v1665
    %v1759 = vunpack.c.l.b16 %v1666
    %v1760 = vunpack.c.h.b16 %v1666
    %v1761 = vunpack.c.l.b16 %v1667
    %v1762 = vunpack.c.h.b16 %v1667
    %v1763 = vunpack.c.l.b16 %v1668
    %v1764 = vunpack.c.h.b16 %v1668
    %v1765 = vunpack.c.l.b16 %v1669
    %v1766 = vunpack.c.h.b16 %v1669
    %v1767 = vunpack.c.l.b16 %v1670
    %v1768 = vunpack.c.h.b16 %v1670
    %v1769 = vunpack.c.l.b16 %v1671
    %v1770 = vunpack.c.h.b16 %v1671
    %v1771 = vunpack.c.l.b16 %v1672
    %v1772 = vunpack.c.h.b16 %v1672
    %v1773 = vunpack.c.l.b16 %v1673
    %v1774 = vunpack.c.h.b16 %v1673
    %v1775 = vunpack.c.l.b16 %v1674
    %v1776 = vunpack.c.h.b16 %v1674
    %v1777 = vunpack.c.l.b16 %v1675
    %v1778 = vunpack.c.h.b16 %v1675
    %v1779 = vunpack.c.l.b16 %v1676
    %v1780 = vunpack.c.h.b16 %v1676
    %v1781 = vunpack.c.l.b16 %v1677
    %v1782 = vunpack.c.h.b16 %v1677
    %v1783 = vunpack.c.l.b16 %v1678
    %v1784 = vunpack.c.h.b16 %v1678
    %v1785 = vunpack.c.l.b16 %v1679
    %v1786 = vunpack.c.h.b16 %v1679
    %v1787 = vunpack.c.l.b16 %v1680
    %v1788 = vunpack.c.h.b16 %v1680
    %v1789 = vpack.c.b16 %v1727, %v1725
    %v1790 = vpack.c.b16 %v1728, %v1726
    %v1791 = vpack.c.b16 %v1731, %v1729
    %v1792 = vpack.c.b16 %v1732, %v1730
    %v1793 = vpack.c.b16 %v1735, %v1733
    %v1794 = vpack.c.b16 %v1736, %v1734
    %v1795 = vpack.c.b16 %v1739, %v1737
    %v1796 = vpack.c.b16 %v1740, %v1738
    %v1797 = vpack.c.b16 %v1743, %v1741
    %v1798 = vpack.c.b16 %v1744, %v1742
    %v1799 = vpack.c.b16 %v1747, %v1745
    %v1800 = vpack.c.b16 %v1748, %v1746
    %v1801 = vpack.c.b16 %v1751, %v1749
    %v1802 = vpack.c.b16 %v1752, %v1750
    %v1803 = vpack.c.b16 %v1755, %v1753
    %v1804 = vpack.c.b16 %v1756, %v1754
    %v1805 = vpack.c.b16 %v1759, %v1757
    %v1806 = vpack.c.b16 %v1760, %v1758
    %v1807 = vpack.c.b16 %v1763, %v1761
    %v1808 = vpack.c.b16 %v1764, %v1762
    %v1809 = vpack.c.b16 %v1767, %v1765
    %v1810 = vpack.c.b16 %v1768, %v1766
    %v1811 = vpack.c.b16 %v1771, %v1769
    %v1812 = vpack.c.b16 %v1772, %v1770
    %v1813 = vpack.c.b16 %v1775, %v1773
    %v1814 = vpack.c.b16 %v1776, %v1774
    %v1815 = vpack.c.b16 %v1779, %v1777
    %v1816 = vpack.c.b16 %v1780, %v1778
    %v1817 = vpack.c.b16 %v1783, %v1781
    %v1818 = vpack.c.b16 %v1784, %v1782
    %v1819 = vpack.c.b16 %v1787, %v1785
    %v1820 = vpack.c.b16 %v1788, %v1786
    %1853 = vmatprep.subr.bf16.mxu0 %v1790
    %1854 = vmatpush1.bf16.msra.mxu0 %v1789
    %1855 = vmatprep.subr.bf16.mxu0 %v1792
    %1856 = vmatpush1.bf16.msra.mxu0 %v1791
    %1857 = vmatprep.subr.bf16.mxu0 %v1794
    %1858 = vmatpush1.bf16.msra.mxu0 %v1793
    %1859 = vmatprep.subr.bf16.mxu0 %v1796
    %1860 = vmatpush1.bf16.msra.mxu0 %v1795
    %1861 = vmatprep.subr.bf16.mxu0 %v1798
    %1862 = vmatpush1.bf16.msra.mxu0 %v1797
    %1863 = vmatprep.subr.bf16.mxu0 %v1800
    %1864 = vmatpush1.bf16.msra.mxu0 %v1799
    %1865 = vmatprep.subr.bf16.mxu0 %v1802
    %1866 = vmatpush1.bf16.msra.mxu0 %v1801
    %1867 = vmatprep.subr.bf16.mxu0 %v1804
    %1868 = vmatpush1.bf16.msra.mxu0 %v1803
    %1869 = vmatprep.subr.bf16.mxu0 %v1806
    %1870 = vmatpush1.bf16.msra.mxu0 %v1805
    %1871 = vmatprep.subr.bf16.mxu0 %v1808
    %1872 = vmatpush1.bf16.msra.mxu0 %v1807
    %1873 = vmatprep.subr.bf16.mxu0 %v1810
    %1874 = vmatpush1.bf16.msra.mxu0 %v1809
    %1875 = vmatprep.subr.bf16.mxu0 %v1812
    %1876 = vmatpush1.bf16.msra.mxu0 %v1811
    %1877 = vmatprep.subr.bf16.mxu0 %v1814
    %1878 = vmatpush1.bf16.msra.mxu0 %v1813
    %1879 = vmatprep.subr.bf16.mxu0 %v1816
    %1880 = vmatpush1.bf16.msra.mxu0 %v1815
    %1881 = vmatprep.subr.bf16.mxu0 %v1818
    %1882 = vmatpush1.bf16.msra.mxu0 %v1817
    %1883 = vmatprep.subr.bf16.mxu0 %v1820
    %1884 = vmatpush1.bf16.msra.mxu0 %v1819
    %1885 = vmatprep.mubr.bf16.mxu0 %v1618
    %1886 = vmatmul.mubr.bf16.gmra.mrb[0].mxu0 %v1617
    %v1887 = vpop.f32.mrb[0].mxu0
    %v1888 = vadd.f32 %v1686, %v1887
    %v1889 = vpop.f32.mrb[0].mxu0
    %v1890 = vadd.f32 %v1690, %v1889
    %v1891 = vpop.f32.mrb[0].mxu0
    %v1892 = vadd.f32 %v1686, %v1891
    %v1893 = vpop.f32.mrb[0].mxu0
    %v1894 = vadd.f32 %v1690, %v1893
    %1895 = vmatprep.mubr.bf16.mxu0 %v1620
    %1896 = vmatmul.mubr.bf16.gmra.mrb[0].mxu0 %v1619
    %v1897 = vpop.f32.mrb[0].mxu0
    %v1898 = vadd.f32 %v1686, %v1897
    %v1899 = vpop.f32.mrb[0].mxu0
    %v1900 = vadd.f32 %v1690, %v1899
    %v1901 = vpop.f32.mrb[0].mxu0
    %v1902 = vadd.f32 %v1686, %v1901
    %v1903 = vpop.f32.mrb[0].mxu0
    %v1904 = vadd.f32 %v1690, %v1903
    %1905 = vmatprep.mubr.bf16.mxu0 %v1622
    %1906 = vmatmul.mubr.bf16.gmra.mrb[0].mxu0 %v1621
    %v1907 = vpop.f32.mrb[0].mxu0
    %v1908 = vadd.f32 %v1686, %v1907
    %v1909 = vpop.f32.mrb[0].mxu0
    %v1910 = vadd.f32 %v1690, %v1909
    %v1911 = vpop.f32.mrb[0].mxu0
    %v1912 = vadd.f32 %v1686, %v1911
    %v1913 = vpop.f32.mrb[0].mxu0
    %v1914 = vadd.f32 %v1690, %v1913
    %1915 = vmatprep.mubr.bf16.mxu0 %v1624
    %1916 = vmatmul.mubr.bf16.gmra.mrb[0].mxu0 %v1623
    %v1917 = vpop.f32.mrb[0].mxu0
    %v1918 = vadd.f32 %v1686, %v1917
    %v1919 = vpop.f32.mrb[0].mxu0
    %v1920 = vadd.f32 %v1690, %v1919
    %v1921 = vpop.f32.mrb[0].mxu0
    %v1922 = vadd.f32 %v1686, %v1921
    %v1923 = vpop.f32.mrb[0].mxu0
    %v1924 = vadd.f32 %v1690, %v1923
    %1925 = vmatprep.mubr.bf16.mxu0 %v1626
    %1926 = vmatmul.mubr.bf16.gmra.mrb[0].mxu0 %v1625
    %v1927 = vpop.f32.mrb[0].mxu0
    %v1928 = vadd.f32 %v1686, %v1927
    %v1929 = vpop.f32.mrb[0].mxu0
    %v1930 = vadd.f32 %v1690, %v1929
    %v1931 = vpop.f32.mrb[0].mxu0
    %v1932 = vadd.f32 %v1686, %v1931
    %v1933 = vpop.f32.mrb[0].mxu0
    %v1934 = vadd.f32 %v1690, %v1933
    %1935 = vmatprep.mubr.bf16.mxu0 %v1628
    %1936 = vmatmul.mubr.bf16.gmra.mrb[0].mxu0 %v1627
    %v1937 = vpop.f32.mrb[0].mxu0
    %v1938 = vadd.f32 %v1686, %v1937
    %v1939 = vpop.f32.mrb[0].mxu0
    %v1940 = vadd.f32 %v1690, %v1939
    %v1941 = vpop.f32.mrb[0].mxu0
    %v1942 = vadd.f32 %v1686, %v1941
    %v1943 = vpop.f32.mrb[0].mxu0
    %v1944 = vadd.f32 %v1690, %v1943
    %1945 = vmatprep.mubr.bf16.mxu0 %v1630
    %1946 = vmatmul.mubr.bf16.gmra.mrb[0].mxu0 %v1629
    %v1947 = vpop.f32.mrb[0].mxu0
    %v1948 = vadd.f32 %v1686, %v1947
    %v1949 = vpop.f32.mrb[0].mxu0
    %v1950 = vadd.f32 %v1690, %v1949
    %v1951 = vpop.f32.mrb[0].mxu0
    %v1952 = vadd.f32 %v1686, %v1951
    %v1953 = vpop.f32.mrb[0].mxu0
    %v1954 = vadd.f32 %v1690, %v1953
    %1955 = vmatprep.mubr.bf16.mxu0 %v1632
    %1956 = vmatmul.mubr.bf16.gmra.mrb[0].mxu0 %v1631
    %v1957 = vpop.f32.mrb[0].mxu0
    %v1958 = vadd.f32 %v1686, %v1957
    %v1959 = vpop.f32.mrb[0].mxu0
    %v1960 = vadd.f32 %v1690, %v1959
    %v1961 = vpop.f32.mrb[0].mxu0
    %v1962 = vadd.f32 %v1686, %v1961
    %v1963 = vpop.f32.mrb[0].mxu0
    %v1964 = vadd.f32 %v1690, %v1963
    %1965 = vmatprep.mubr.bf16.mxu0 %v1634
    %1966 = vmatmul.mubr.bf16.gmra.mrb[0].mxu0 %v1633
    %v1967 = vpop.f32.mrb[0].mxu0
    %v1968 = vadd.f32 %v1686, %v1967
    %v1969 = vpop.f32.mrb[0].mxu0
    %v1970 = vadd.f32 %v1690, %v1969
    %v1971 = vpop.f32.mrb[0].mxu0
    %v1972 = vadd.f32 %v1686, %v1971
    %v1973 = vpop.f32.mrb[0].mxu0
    %v1974 = vadd.f32 %v1690, %v1973
    %1975 = vmatprep.mubr.bf16.mxu0 %v1636
    %1976 = vmatmul.mubr.bf16.gmra.mrb[0].mxu0 %v1635
    %v1977 = vpop.f32.mrb[0].mxu0
    %v1978 = vadd.f32 %v1686, %v1977
    %v1979 = vpop.f32.mrb[0].mxu0
    %v1980 = vadd.f32 %v1690, %v1979
    %v1981 = vpop.f32.mrb[0].mxu0
    %v1982 = vadd.f32 %v1686, %v1981
    %v1983 = vpop.f32.mrb[0].mxu0
    %v1984 = vadd.f32 %v1690, %v1983
    %1985 = vmatprep.mubr.bf16.mxu0 %v1638
    %1986 = vmatmul.mubr.bf16.gmra.mrb[0].mxu0 %v1637
    %v1987 = vpop.f32.mrb[0].mxu0
    %v1988 = vadd.f32 %v1686, %v1987
    %v1989 = vpop.f32.mrb[0].mxu0
    %v1990 = vadd.f32 %v1690, %v1989
    %v1991 = vpop.f32.mrb[0].mxu0
    %v1992 = vadd.f32 %v1686, %v1991
    %v1993 = vpop.f32.mrb[0].mxu0
    %v1994 = vadd.f32 %v1690, %v1993
    %1995 = vmatprep.mubr.bf16.mxu0 %v1640
    %1996 = vmatmul.mubr.bf16.gmra.mrb[0].mxu0 %v1639
    %v1997 = vpop.f32.mrb[0].mxu0
    %v1998 = vadd.f32 %v1686, %v1997
    %v1999 = vpop.f32.mrb[0].mxu0
    %v2000 = vadd.f32 %v1690, %v1999
    %v2001 = vpop.f32.mrb[0].mxu0
    %v2002 = vadd.f32 %v1686, %v2001
    %v2003 = vpop.f32.mrb[0].mxu0
    %v2004 = vadd.f32 %v1690, %v2003
    %2005 = vmatprep.mubr.bf16.mxu0 %v1642
    %2006 = vmatmul.mubr.bf16.gmra.mrb[0].mxu0 %v1641
    %v2007 = vpop.f32.mrb[0].mxu0
    %v2008 = vadd.f32 %v1686, %v2007
    %v2009 = vpop.f32.mrb[0].mxu0
    %v2010 = vadd.f32 %v1690, %v2009
    %v2011 = vpop.f32.mrb[0].mxu0
    %v2012 = vadd.f32 %v1686, %v2011
    %v2013 = vpop.f32.mrb[0].mxu0
    %v2014 = vadd.f32 %v1690, %v2013
    %2015 = vmatprep.mubr.bf16.mxu0 %v1644
    %2016 = vmatmul.mubr.bf16.gmra.mrb[0].mxu0 %v1643
    %v2017 = vpop.f32.mrb[0].mxu0
    %v2018 = vadd.f32 %v1686, %v2017
    %v2019 = vpop.f32.mrb[0].mxu0
    %v2020 = vadd.f32 %v1690, %v2019
    %v2021 = vpop.f32.mrb[0].mxu0
    %v2022 = vadd.f32 %v1686, %v2021
    %v2023 = vpop.f32.mrb[0].mxu0
    %v2024 = vadd.f32 %v1690, %v2023
    %2025 = vmatprep.mubr.bf16.mxu0 %v1646
    %2026 = vmatmul.mubr.bf16.gmra.mrb[0].mxu0 %v1645
    %v2027 = vpop.f32.mrb[0].mxu0
    %v2028 = vadd.f32 %v1686, %v2027
    %v2029 = vpop.f32.mrb[0].mxu0
    %v2030 = vadd.f32 %v1690, %v2029
    %v2031 = vpop.f32.mrb[0].mxu0
    %v2032 = vadd.f32 %v1686, %v2031
    %v2033 = vpop.f32.mrb[0].mxu0
    %v2034 = vadd.f32 %v1690, %v2033
    %2035 = vmatprep.mubr.bf16.mxu0 %v1648
    %2036 = vmatmul.mubr.bf16.gmra.mrb[0].mxu0 %v1647
    %v2037 = vpop.f32.mrb[0].mxu0
    %v2038 = vadd.f32 %v1686, %v2037
    %v2039 = vpop.f32.mrb[0].mxu0
    %v2040 = vadd.f32 %v1690, %v2039
    %v2041 = vpop.f32.mrb[0].mxu0
    %v2042 = vadd.f32 %v1686, %v2041
    %v2043 = vpop.f32.mrb[0].mxu0
    %v2044 = vadd.f32 %v1690, %v2043
    %2045 = vdwg.mxu0
    %v2046 = vpack.c.bf16 %v1892, %v1888
    %v2047 = vpack.c.bf16 %v1894, %v1890
    %v2048 = vpack.c.bf16 %v1902, %v1898
    %v2049 = vpack.c.bf16 %v1904, %v1900
    %v2050 = vpack.c.bf16 %v1912, %v1908
    %v2051 = vpack.c.bf16 %v1914, %v1910
    %v2052 = vpack.c.bf16 %v1922, %v1918
    %v2053 = vpack.c.bf16 %v1924, %v1920
    %v2054 = vpack.c.bf16 %v1932, %v1928
    %v2055 = vpack.c.bf16 %v1934, %v1930
    %v2056 = vpack.c.bf16 %v1942, %v1938
    %v2057 = vpack.c.bf16 %v1944, %v1940
    %v2058 = vpack.c.bf16 %v1952, %v1948
    %v2059 = vpack.c.bf16 %v1954, %v1950
    %v2060 = vpack.c.bf16 %v1962, %v1958
    %v2061 = vpack.c.bf16 %v1964, %v1960
    %v2062 = vpack.c.bf16 %v1972, %v1968
    %v2063 = vpack.c.bf16 %v1974, %v1970
    %v2064 = vpack.c.bf16 %v1982, %v1978
    %v2065 = vpack.c.bf16 %v1984, %v1980
    %v2066 = vpack.c.bf16 %v1992, %v1988
    %v2067 = vpack.c.bf16 %v1994, %v1990
    %v2068 = vpack.c.bf16 %v2002, %v1998
    %v2069 = vpack.c.bf16 %v2004, %v2000
    %v2070 = vpack.c.bf16 %v2012, %v2008
    %v2071 = vpack.c.bf16 %v2014, %v2010
    %v2072 = vpack.c.bf16 %v2022, %v2018
    %v2073 = vpack.c.bf16 %v2024, %v2020
    %v2074 = vpack.c.bf16 %v2032, %v2028
    %v2075 = vpack.c.bf16 %v2034, %v2030
    %v2076 = vpack.c.bf16 %v2042, %v2038
    %v2077 = vpack.c.bf16 %v2044, %v2040
    %v2110 = vunpack.c.l.b16 %v2046
    %v2111 = vunpack.c.l.b16 %v2047
    %v2112 = vunpack.c.h.b16 %v2046
    %v2113 = vunpack.c.h.b16 %v2047
    %v2114 = vunpack.c.l.b16 %v2048
    %v2115 = vunpack.c.l.b16 %v2049
    %v2116 = vunpack.c.h.b16 %v2048
    %v2117 = vunpack.c.h.b16 %v2049
    %v2118 = vunpack.c.l.b16 %v2050
    %v2119 = vunpack.c.l.b16 %v2051
    %v2120 = vunpack.c.h.b16 %v2050
    %v2121 = vunpack.c.h.b16 %v2051
    %v2122 = vunpack.c.l.b16 %v2052
    %v2123 = vunpack.c.l.b16 %v2053
    %v2124 = vunpack.c.h.b16 %v2052
    %v2125 = vunpack.c.h.b16 %v2053
    %v2126 = vunpack.c.l.b16 %v2054
    %v2127 = vunpack.c.l.b16 %v2055
    %v2128 = vunpack.c.h.b16 %v2054
    %v2129 = vunpack.c.h.b16 %v2055
    %v2130 = vunpack.c.l.b16 %v2056
    %v2131 = vunpack.c.l.b16 %v2057
    %v2132 = vunpack.c.h.b16 %v2056
    %v2133 = vunpack.c.h.b16 %v2057
    %v2134 = vunpack.c.l.b16 %v2058
    %v2135 = vunpack.c.l.b16 %v2059
    %v2136 = vunpack.c.h.b16 %v2058
    %v2137 = vunpack.c.h.b16 %v2059
    %v2138 = vunpack.c.l.b16 %v2060
    %v2139 = vunpack.c.l.b16 %v2061
    %v2140 = vunpack.c.h.b16 %v2060
    %v2141 = vunpack.c.h.b16 %v2061
    %v2142 = vunpack.c.l.b16 %v2062
    %v2143 = vunpack.c.l.b16 %v2063
    %v2144 = vunpack.c.h.b16 %v2062
    %v2145 = vunpack.c.h.b16 %v2063
    %v2146 = vunpack.c.l.b16 %v2064
    %v2147 = vunpack.c.l.b16 %v2065
    %v2148 = vunpack.c.h.b16 %v2064
    %v2149 = vunpack.c.h.b16 %v2065
    %v2150 = vunpack.c.l.b16 %v2066
    %v2151 = vunpack.c.l.b16 %v2067
    %v2152 = vunpack.c.h.b16 %v2066
    %v2153 = vunpack.c.h.b16 %v2067
    %v2154 = vunpack.c.l.b16 %v2068
    %v2155 = vunpack.c.l.b16 %v2069
    %v2156 = vunpack.c.h.b16 %v2068
    %v2157 = vunpack.c.h.b16 %v2069
    %v2158 = vunpack.c.l.b16 %v2070
    %v2159 = vunpack.c.l.b16 %v2071
    %v2160 = vunpack.c.h.b16 %v2070
    %v2161 = vunpack.c.h.b16 %v2071
    %v2162 = vunpack.c.l.b16 %v2072
    %v2163 = vunpack.c.l.b16 %v2073
    %v2164 = vunpack.c.h.b16 %v2072
    %v2165 = vunpack.c.h.b16 %v2073
    %v2166 = vunpack.c.l.b16 %v2074
    %v2167 = vunpack.c.l.b16 %v2075
    %v2168 = vunpack.c.h.b16 %v2074
    %v2169 = vunpack.c.h.b16 %v2075
    %v2170 = vunpack.c.l.b16 %v2076
    %v2171 = vunpack.c.l.b16 %v2077
    %v2172 = vunpack.c.h.b16 %v2076
    %v2173 = vunpack.c.h.b16 %v2077
    %v2174 = vpack.c.b16 %v2111, %v2110
    %v2175 = vpack.c.b16 %v2113, %v2112
    %v2176 = vpack.c.b16 %v2115, %v2114
    %v2177 = vpack.c.b16 %v2117, %v2116
    %v2178 = vpack.c.b16 %v2119, %v2118
    %v2179 = vpack.c.b16 %v2121, %v2120
    %v2180 = vpack.c.b16 %v2123, %v2122
    %v2181 = vpack.c.b16 %v2125, %v2124
    %v2182 = vpack.c.b16 %v2127, %v2126
    %v2183 = vpack.c.b16 %v2129, %v2128
    %v2184 = vpack.c.b16 %v2131, %v2130
    %v2185 = vpack.c.b16 %v2133, %v2132
    %v2186 = vpack.c.b16 %v2135, %v2134
    %v2187 = vpack.c.b16 %v2137, %v2136
    %v2188 = vpack.c.b16 %v2139, %v2138
    %v2189 = vpack.c.b16 %v2141, %v2140
    %v2190 = vpack.c.b16 %v2143, %v2142
    %v2191 = vpack.c.b16 %v2145, %v2144
    %v2192 = vpack.c.b16 %v2147, %v2146
    %v2193 = vpack.c.b16 %v2149, %v2148
    %v2194 = vpack.c.b16 %v2151, %v2150
    %v2195 = vpack.c.b16 %v2153, %v2152
    %v2196 = vpack.c.b16 %v2155, %v2154
    %v2197 = vpack.c.b16 %v2157, %v2156
    %v2198 = vpack.c.b16 %v2159, %v2158
    %v2199 = vpack.c.b16 %v2161, %v2160
    %v2200 = vpack.c.b16 %v2163, %v2162
    %v2201 = vpack.c.b16 %v2165, %v2164
    %v2202 = vpack.c.b16 %v2167, %v2166
    %v2203 = vpack.c.b16 %v2169, %v2168
    %v2204 = vpack.c.b16 %v2171, %v2170
    %v2205 = vpack.c.b16 %v2173, %v2172
    %2238 = vst [vmem:[#allocation16] sm:$0xff] %v2174
    %2239 = vst [vmem:[#allocation16 + $0x8] sm:$0xff] %v2175
    %2240 = vst [vmem:[#allocation16 + $0x10] sm:$0xff] %v2176
    %2241 = vst [vmem:[#allocation16 + $0x18] sm:$0xff] %v2177
    %2242 = vst [vmem:[#allocation16 + $0x20] sm:$0xff] %v2178
    %2243 = vst [vmem:[#allocation16 + $0x28] sm:$0xff] %v2179
    %2244 = vst [vmem:[#allocation16 + $0x30] sm:$0xff] %v2180
    %2245 = vst [vmem:[#allocation16 + $0x38] sm:$0xff] %v2181
    %2246 = vst [vmem:[#allocation16 + $0x40] sm:$0xff] %v2182
    %2247 = vst [vmem:[#allocation16 + $0x48] sm:$0xff] %v2183
    %2248 = vst [vmem:[#allocation16 + $0x50] sm:$0xff] %v2184
    %2249 = vst [vmem:[#allocation16 + $0x58] sm:$0xff] %v2185
    %2250 = vst [vmem:[#allocation16 + $0x60] sm:$0xff] %v2186
    %2251 = vst [vmem:[#allocation16 + $0x68] sm:$0xff] %v2187
    %2252 = vst [vmem:[#allocation16 + $0x70] sm:$0xff] %v2188
    %2253 = vst [vmem:[#allocation16 + $0x78] sm:$0xff] %v2189
    %2254 = vst [vmem:[#allocation16 + $0x80] sm:$0xff] %v2190
    %2255 = vst [vmem:[#allocation16 + $0x88] sm:$0xff] %v2191
    %2256 = vst [vmem:[#allocation16 + $0x90] sm:$0xff] %v2192
    %2257 = vst [vmem:[#allocation16 + $0x98] sm:$0xff] %v2193
    %2258 = vst [vmem:[#allocation16 + $0xa0] sm:$0xff] %v2194
    %2259 = vst [vmem:[#allocation16 + $0xa8] sm:$0xff] %v2195
    %2260 = vst [vmem:[#allocation16 + $0xb0] sm:$0xff] %v2196
    %2261 = vst [vmem:[#allocation16 + $0xb8] sm:$0xff] %v2197
    %2262 = vst [vmem:[#allocation16 + $0xc0] sm:$0xff] %v2198
    %2263 = vst [vmem:[#allocation16 + $0xc8] sm:$0xff] %v2199
    %2264 = vst [vmem:[#allocation16 + $0xd0] sm:$0xff] %v2200
    %2265 = vst [vmem:[#allocation16 + $0xd8] sm:$0xff] %v2201
    %2266 = vst [vmem:[#allocation16 + $0xe0] sm:$0xff] %v2202
    %2267 = vst [vmem:[#allocation16 + $0xe8] sm:$0xff] %v2203
    %2268 = vst [vmem:[#allocation16 + $0xf0] sm:$0xff] %v2204
    %2269 = vst [vmem:[#allocation16 + $0xf8] sm:$0xff] %v2205
    // Predicated region
    $region62: #{tpu_custom_call.1} parent=1 // pred_check
      _
    $region63: #{tpu_custom_call.1} parent=1 // pred_check_branch
      %2271 = sbr.rel (0) target = $region65
    $region64: #{tpu_custom_call.1} parent=1 // pred_region
      %s2273 = ssub.s32 4096, 4096
      %2274 = vsyncadd [#allocation4], %s2273
      %s2275 = sshll.u32 [#allocation13], 4
      %s2276 = int_to_ptr.vmem [resolvable:$true] %s2275
      %2281 = dma.vmem_to_hbm [thread:$0]  %s2276, 4096, %s9, [#allocation4], 128, 128, 8
    $region65: #{tpu_custom_call.1} parent=1 // pred_fallthru
      _
    // Predicated region
    $region66: #{tpu_custom_call.1} parent=1 // pred_check
      _
    $region67: #{tpu_custom_call.1} parent=1 // pred_check_branch
      %2283 = sbr.rel (0) target = $region69
    $region68: #{tpu_custom_call.1} parent=1 // pred_region
      %s2285 = ssub.s32 4096, 4096
      %2286 = vsyncadd [#allocation15], %s2285
      %s2287 = sshll.u32 [#allocation14], 4
      %s2288 = int_to_ptr.vmem [resolvable:$true] %s2287
      %2293 = dma.vmem_to_hbm [thread:$0]  %s2288, 4096, %s10, [#allocation15], 128, 128, 8
    $region69: #{tpu_custom_call.1} parent=1 // pred_fallthru
      _
    // Predicated region
    $region70: #{tpu_custom_call.1} parent=1 // pred_check
      _
    $region71: #{tpu_custom_call.1} parent=1 // pred_check_branch
      %2295 = sbr.rel (0) target = $region73
    $region72: #{tpu_custom_call.1} parent=1 // pred_region
      %s2297 = ssub.s32 4096, 4096
      %2298 = vsyncadd [#allocation15], %s2297
      %s2299 = sshll.u32 [#allocation16], 4
      %s2300 = int_to_ptr.vmem [resolvable:$true] %s2299
      %2305 = dma.vmem_to_hbm [thread:$0]  %s2300, 4096, %s11, [#allocation15], 128, 128, 8
    $region73: #{tpu_custom_call.1} parent=1 // pred_fallthru
      _
    // Predicated region
    $region74: #{tpu_custom_call.1} parent=1 // pred_check
      _
    $region75: #{tpu_custom_call.1} parent=1 // pred_check_branch
      %2307 = sbr.rel (0) target = $region77
    $region76: #{tpu_custom_call.1} parent=1 // pred_region
      %2308 = dma.done [#allocation4], 4096
    $region77: #{tpu_custom_call.1} parent=1 // pred_fallthru
      _
    // Predicated region
    $region78: #{tpu_custom_call.1} parent=1 // pred_check
      _
    $region79: #{tpu_custom_call.1} parent=1 // pred_check_branch
      %2310 = sbr.rel (0) target = $region81
    $region80: #{tpu_custom_call.1} parent=1 // pred_region
      %2311 = dma.done [#allocation15], 4096
    $region81: #{tpu_custom_call.1} parent=1 // pred_fallthru
      _
    // Predicated region
    $region82: #{tpu_custom_call.1} parent=1 // pred_check
      _
    $region83: #{tpu_custom_call.1} parent=1 // pred_check_branch
      %2313 = sbr.rel (0) target = $region85
    $region84: #{tpu_custom_call.1} parent=1 // pred_region
      %2314 = dma.done [#allocation15], 4096
    $region85: #{tpu_custom_call.1} parent=1 // pred_fallthru
      _
    %2315 = vsyncpa [#allocation3], 1
    %2316 = vsyncpa [#allocation6], 1
    %2317 = vsyncpa [#allocation9], 1
    %2318 = vsyncpa [#allocation12], 1
    %2319 = vsyncpa [#allocation4], 1
    %2320 = vsyncpa [#allocation15], 1

</llo_original>
